<compile_context>
chip_gen: v6e
topology: v6e:2x2x1
jax: 0.10.0
libtpu: 0.0.40
codegen_flags: <defaults>
</compile_context>

<pallas_src>
import functools

import jax
import jax.numpy as jnp
import numpy as np
from jax.experimental import pallas as pl
from jax.experimental.pallas import tpu as pltpu


def _round_up(x, m):
    return ((x + m - 1) // m) * m


@functools.lru_cache(maxsize=None)
def _vmem_limit_bytes():
    """Scoped-VMEM limit, queried lazily (TPU backend may not exist at import)."""
    cap = 128 << 20
    try:
        cap = int(pltpu.get_tpu_info().vmem_capacity_bytes)
    except Exception:
        pass
    # 48 MiB is plenty for a bandwidth-bound kernel (TB ~ 256-512 already
    # amortises the per-step overhead) and leaves headroom for Mosaic scratch
    # even on v7x (64 MiB physical).
    return int(min(48 << 20, max(cap - (16 << 20), 8 << 20)))


def _pick_tb(n_neg, d, n_user_rows, n_comb_rows, vmem_limit):
    """Largest batch tile (multiple of 8, <=512) whose real (lane/sublane padded)
    VMEM working set fits in ~half of the scoped-VMEM limit."""
    f32, bf16 = 4, 2
    d_pad = _round_up(d, 128)
    n_lane = _round_up(n_neg, 128)
    w_out = _round_up(n_neg + 2, 128)
    ru_pad = _round_up(n_user_rows, 128)
    rc_pad = _round_up(n_comb_rows, 128)
    ru_sub = _round_up(n_user_rows, 8)
    rc_sub = _round_up(n_comb_rows, 8)

    # Grid-invariant VMEM: resident table blocks (double-buffered by the
    # pipeline machinery) plus their in-kernel bf16 hi/mid/lo splits.
    fixed = 2 * (ru_sub + rc_sub) * d_pad * f32
    fixed += 3 * (ru_sub + rc_sub) * d_pad * bf16

    per_row = 0
    per_row += 2 * 128 * f32                      # (tb, 4) pos_idx block, lane-padded, x2 bufs
    per_row += 2 * 3 * n_lane * f32               # (tb, 3, N) neg_idx block, x2 bufs
    per_row += 2 * w_out * f32                    # (tb, W) output block, x2 bufs
    per_row += n_neg * rc_pad * (f32 + bf16)      # negative one-hot (f32 sum + bf16 copy)
    per_row += (ru_pad + rc_pad) * (f32 + bf16)   # user / positive one-hots
    per_row += 3 * n_neg * d_pad * f32            # gathered negatives / diffs / squares
    per_row += 8 * d_pad * f32                    # user / positive rows and diffs
    per_row += 4 * n_lane * f32                   # neg_d and friends

    budget = vmem_limit // 2
    if fixed + 8 * per_row > budget:
        raise ValueError(
            "Embedding tables too large for the VMEM-resident fused-gather CML "
            "kernel; use a per-row DMA gather instead (see TODO in module header).")
    tb = (budget - fixed) // per_row
    return max(8, min(512, (tb // 8) * 8))


def _split3_bf16(x):
    """Exact 3-way bf16 split of an f32 array: hi + mid + lo == x (to ~2^-33)."""
    hi = x.astype(jnp.bfloat16)
    r = x - hi.astype(jnp.float32)
    mid = r.astype(jnp.bfloat16)
    lo = (r - mid.astype(jnp.float32)).astype(jnp.bfloat16)
    return hi, mid, lo


def cml_kernel(pos_idx_ref, neg_idx_ref, user_tbl_ref, comb_tbl_ref, out_ref):
    tb = pos_idx_ref.shape[0]
    n_neg = neg_idx_ref.shape[2]
    d = user_tbl_ref.shape[1]
    r_user = user_tbl_ref.shape[0]
    r_comb = comb_tbl_ref.shape[0]
    f32 = jnp.float32

    # Exact hi/mid/lo bf16 splits of the VMEM-resident f32 tables.
    u_hi, u_mid, u_lo = _split3_bf16(user_tbl_ref[...])
    c_hi, c_mid, c_lo = _split3_bf16(comb_tbl_ref[...])

    def mxu_gather(one_hot, hi, mid, lo):
        # one_hot: bf16 (G, R) with exact 0/1 entries -> exact f32 row gather/sum.
        acc = jnp.dot(one_hot, hi, preferred_element_type=f32)
        acc = acc + jnp.dot(one_hot, mid, preferred_element_type=f32)
        acc = acc + jnp.dot(one_hot, lo, preferred_element_type=f32)
        return acc

    pos_idx = pos_idx_ref[...]                      # (tb, 4) int32
    neg_idx = neg_idx_ref[...]                      # (tb, 3, n_neg) int32

    # ---- user & positive item -------------------------------------------------
    iota_u = jax.lax.broadcasted_iota(jnp.int32, (tb, r_user), 1)
    oh_user = (iota_u == pos_idx[:, 0:1]).astype(jnp.bfloat16)
    users = mxu_gather(oh_user, u_hi, u_mid, u_lo)                     # (tb, d)

    # One one-hot row carries all three ones (item / artist / album indices are
    # pre-offset into the combined table), so a single gather yields the SUM.
    iota_c = jax.lax.broadcasted_iota(jnp.int32, (tb, r_comb), 1)
    oh_pos = ((iota_c == pos_idx[:, 1:2]).astype(f32)
              + (iota_c == pos_idx[:, 2:3]).astype(f32)
              + (iota_c == pos_idx[:, 3:4]).astype(f32)).astype(jnp.bfloat16)
    pos_items = mxu_gather(oh_pos, c_hi, c_mid, c_lo) / 3.0            # (tb, d)

    dp = users - pos_items
    pos_d = jnp.sum(dp * dp, axis=-1, keepdims=True)                   # (tb, 1)

    # ---- negatives --------------------------------------------------------------
    iota_n = jax.lax.broadcasted_iota(jnp.int32, (tb, n_neg, r_comb), 2)
    oh_neg = ((iota_n == neg_idx[:, 0, :][:, :, None]).astype(f32)
              + (iota_n == neg_idx[:, 1, :][:, :, None]).astype(f32)
              + (iota_n == neg_idx[:, 2, :][:, :, None]).astype(f32)
              ).astype(jnp.bfloat16)                                    # (tb, n_neg, r_comb)
    # n_neg is padded to a multiple of 16 by the wrapper, so these reshapes are
    # layout-trivial (leading-dim merge / split only).
    neg_items = mxu_gather(oh_neg.reshape(tb * n_neg, r_comb),
                           c_hi, c_mid, c_lo).reshape(tb, n_neg, d) / 3.0

    dn = users[:, None, :] - neg_items                                  # (tb, n_neg, d)
    neg_d = jnp.sum(dn * dn, axis=-1)                                   # (tb, n_neg)
    closest = jnp.min(neg_d, axis=-1, keepdims=True)                    # (tb, 1)

    # Lane-dense combined output slab: lanes [0, n_neg) = neg distances,
    # lane n_neg = pos_d, lane n_neg+1 = closest, rest = padding (sliced off).
    lane = jax.lax.broadcasted_iota(jnp.int32, out_ref.shape, 1)
    out_ref[...] = jnp.where(lane == n_neg + 1, closest, pos_d)
    out_ref[:, :n_neg] = neg_d


def cml_forward_pallas(user_table, comb_table, pos_idx, neg_idx, *, tb=None):
    """user_table: (U, D) f32; comb_table: (I+A+L, D) f32;
       pos_idx: (B, 4) int32 = [user, item, artist+off, album+off];
       neg_idx: (B, 3, N) int32, already offset into comb_table rows."""
    B = pos_idx.shape[0]
    n_true = neg_idx.shape[2]
    d = user_table.shape[1]
    r_user, r_comb = user_table.shape[0], comb_table.shape[0]

    # Pad N to a multiple of 16 (bf16 sublane tile) by repeating the last
    # negative, so in-kernel reshapes stay trivial and the min is unaffected.
    n_k = max(16, _round_up(n_true, 16))
    if n_k != n_true:
        neg_idx = jnp.pad(neg_idx, ((0, 0), (0, 0), (0, n_k - n_true)), mode="edge")

    vmem_limit = _vmem_limit_bytes()
    if tb is None:
        tb = _pick_tb(n_k, d, r_user, r_comb, vmem_limit)
    tb = max(8, (int(tb) // 8) * 8)
    # Keep >= 2 (ideally 4) grid steps so the BlockSpec pipeline can prefetch
    # and v7x megacore sharding has independent work.
    if B > 8:
        target_steps = 4 if B >= 32 else 2
        tb = min(tb, max(8, _round_up(-(-B // target_steps), 8)))

    b_pad = _round_up(B, tb)
    if b_pad != B:  # only tiny int32 index arrays are padded (cheap)
        pos_idx = jnp.pad(pos_idx, ((0, b_pad - B), (0, 0)), mode="edge")
        neg_idx = jnp.pad(neg_idx, ((0, b_pad - B), (0, 0), (0, 0)), mode="edge")

    w_out = _round_up(n_k + 2, 128)
    grid = (b_pad // tb,)

    out = pl.pallas_call(
        cml_kernel,
        grid=grid,
        in_specs=[
            pl.BlockSpec((tb, pos_idx.shape[1]), lambda i: (i, 0)),
            pl.BlockSpec((tb, 3, n_k), lambda i: (i, 0, 0)),
            # Tables: full-array blocks with a constant block index -> DMA'd into
            # VMEM once and kept resident across all grid steps.
            pl.BlockSpec((r_user, d), lambda i: (0, 0)),
            pl.BlockSpec((r_comb, d), lambda i: (0, 0)),
        ],
        out_specs=pl.BlockSpec((tb, w_out), lambda i: (i, 0)),
        out_shape=jax.ShapeDtypeStruct((b_pad, w_out), jnp.float32),
        compiler_params=pltpu.CompilerParams(
            dimension_semantics=("parallel",),
            vmem_limit_bytes=vmem_limit),
    )(pos_idx, neg_idx, user_table, comb_table)

    pos_d = out[:B, n_k]
    neg_d = out[:B, :n_true]
    closest = out[:B, n_k + 1]
    return pos_d, neg_d, closest


class CMLPallas:
    """JAX/Pallas version of the PyTorch CML module's forward pass."""

    def __init__(self, n_users, n_items, n_artists, n_albums, embed_dim, key):
        std = 1.0 / (embed_dim ** 0.5)
        k1, k2, k3, k4 = jax.random.split(key, 4)
        self.n_users, self.n_items = n_users, n_items
        self.n_artists, self.n_albums = n_artists, n_albums
        self.embed_dim = embed_dim
        self.user_embeddings = std * jax.random.normal(k1, (n_users, embed_dim), jnp.float32)
        self.item_embeddings = std * jax.random.normal(k2, (n_items, embed_dim), jnp.float32)
        self.artist_embeddings = std * jax.random.normal(k3, (n_artists, embed_dim), jnp.float32)
        self.album_embeddings = std * jax.random.normal(k4, (n_albums, embed_dim), jnp.float32)

    def forward(self, user_positive_items_pairs, pos_artists, pos_albums,
                neg_samples, neg_artists, neg_albums, titles=None, titles_len=None,
                *, tb=None):
        # titles / titles_len are accepted but unused, exactly as in the PyTorch forward.
        off_artist = self.n_items
        off_album = self.n_items + self.n_artists
        pos_idx = jnp.stack(
            [user_positive_items_pairs[:, 0],
             user_positive_items_pairs[:, 1],
             pos_artists + off_artist,
             pos_albums + off_album], axis=1).astype(jnp.int32)          # (B, 4)
        neg_idx = jnp.stack(
            [neg_samples, neg_artists + off_artist, neg_albums + off_album],
            axis=1).astype(jnp.int32)                                     # (B, 3, N)
        comb_table = jnp.concatenate(
            [self.item_embeddings, self.artist_embeddings, self.album_embeddings],
            axis=0)
        return cml_forward_pallas(self.user_embeddings, comb_table,
                                  pos_idx, neg_idx, tb=tb)


def _reference_forward(model, pairs, pos_artists, pos_albums,
                       neg_samples, neg_artists, neg_albums):
    users = model.user_embeddings[pairs[:, 0]]
    pos_items = (model.item_embeddings[pairs[:, 1]]
                 + model.artist_embeddings[pos_artists]
                 + model.album_embeddings[pos_albums]) / 3.0
    pos_d = jnp.sum((users - pos_items) ** 2, axis=1)
    neg_items = (model.item_embeddings[neg_samples]
                 + model.artist_embeddings[neg_artists]
                 + model.album_embeddings[neg_albums]) / 3.0              # (B, N, D)
    neg_d = jnp.sum((users[:, None, :] - neg_items) ** 2, axis=-1)        # (B, N)
    closest = jnp.min(neg_d, axis=1)
    return pos_d, neg_d, closest


if __name__ == "__main__":
    key = jax.random.PRNGKey(0)
    k_model, k_data = jax.random.split(key)

    n_users, n_items, n_artists, n_albums = 50, 60, 20, 30
    embed_dim = 32
    model = CMLPallas(n_users, n_items, n_artists, n_albums, embed_dim, k_model)

    def make_batch(k, B, N):
        ks = jax.random.split(k, 7)
        user_ids = jax.random.randint(ks[0], (B,), 0, n_users)
        pos_items = jax.random.randint(ks[1], (B,), 0, n_items)
        pairs = jnp.stack([user_ids, pos_items], axis=1)                  # (B, 2)
        pos_artists = jax.random.randint(ks[2], (B,), 0, n_artists)
        pos_albums = jax.random.randint(ks[3], (B,), 0, n_albums)
        neg_samples = jax.random.randint(ks[4], (B, N), 0, n_items)
        neg_artists = jax.random.randint(ks[5], (B, N), 0, n_artists)
        neg_albums = jax.random.randint(ks[6], (B, N), 0, n_albums)
        return pairs, pos_artists, pos_albums, neg_samples, neg_artists, neg_albums

    k1, k2 = jax.random.split(k_data)

    # Config 1: B=16, N=16 -> two grid steps (exercises the pipeline / megacore path).
    batch = make_batch(k1, 16, 16)
    titles = jnp.zeros((16, 4), jnp.int32)       # unused by forward (as in PyTorch)
    titles_len = jnp.ones((16,), jnp.int32)      # unused by forward
    pos_d, neg_d, closest = model.forward(*batch, titles, titles_len)
    jax.block_until_ready((pos_d, neg_d, closest))
    assert pos_d.shape == (16,) and neg_d.shape == (16, 16) and closest.shape == (16,)
    ref = _reference_forward(model, *batch)
    np.testing.assert_allclose(np.asarray(pos_d), np.asarray(ref[0]), rtol=1e-5, atol=1e-5)
    np.testing.assert_allclose(np.asarray(neg_d), np.asarray(ref[1]), rtol=1e-5, atol=1e-5)
    np.testing.assert_allclose(np.asarray(closest), np.asarray(ref[2]), rtol=1e-5, atol=1e-5)

    # Config 2: ragged sizes (B=20, N=7) -> exercises batch padding and N padding.
    batch2 = make_batch(k2, 20, 7)
    pos_d2, neg_d2, closest2 = model.forward(*batch2)
    jax.block_until_ready((pos_d2, neg_d2, closest2))
    assert pos_d2.shape == (20,) and neg_d2.shape == (20, 7) and closest2.shape == (20,)
    ref2 = _reference_forward(model, *batch2)
    np.testing.assert_allclose(np.asarray(pos_d2), np.asarray(ref2[0]), rtol=1e-5, atol=1e-5)
    np.testing.assert_allclose(np.asarray(neg_d2), np.asarray(ref2[1]), rtol=1e-5, atol=1e-5)
    np.testing.assert_allclose(np.asarray(closest2), np.asarray(ref2[2]), rtol=1e-5, atol=1e-5)

    print("KERNEL_OK")
</pallas_src>

<mosaic_0001>
module attributes {stable_mosaic.version = 11 : i64} {
  func.func @cml_kernel(%arg0: i32, %arg1: memref<8x4xi32, #tpu.memory_space<vmem>>, %arg2: memref<8x3x16xi32, #tpu.memory_space<vmem>>, %arg3: memref<50x32xf32, #tpu.memory_space<vmem>>, %arg4: memref<110x32xf32, #tpu.memory_space<vmem>>, %arg5: memref<8x128xf32, #tpu.memory_space<vmem>>) attributes {dimension_semantics = [#tpu.dimension_semantics<parallel>], iteration_bounds = array<i64: 2>, scalar_prefetch = 0 : i64, scratch_operands = 0 : i64, tpu.core_type = #tpu.core_type<tc>, window_params = [{transform_indices = @transform_0, window_bounds = array<i64: 8, 4>}, {transform_indices = @transform_1, window_bounds = array<i64: 8, 3, 16>}, {pipeline_mode = #tpu.pipeline_mode<synchronous>, transform_indices = @transform_2, window_bounds = array<i64: 50, 32>}, {pipeline_mode = #tpu.pipeline_mode<synchronous>, transform_indices = @transform_3, window_bounds = array<i64: 110, 32>}, {transform_indices = @transform_4, window_bounds = array<i64: 8, 128>}]} {
    %c0 = arith.constant 0 : index
    %c0_0 = arith.constant 0 : index
    %0 = vector.load %arg3[%c0, %c0_0] : memref<50x32xf32, #tpu.memory_space<vmem>>, vector<50x32xf32>
    %1 = arith.truncf %0 : vector<50x32xf32> to vector<50x32xbf16>
    %2 = arith.extf %1 : vector<50x32xbf16> to vector<50x32xf32>
    %3 = arith.subf %0, %2 : vector<50x32xf32>
    %4 = arith.truncf %3 : vector<50x32xf32> to vector<50x32xbf16>
    %5 = arith.extf %4 : vector<50x32xbf16> to vector<50x32xf32>
    %6 = arith.subf %3, %5 : vector<50x32xf32>
    %7 = arith.truncf %6 : vector<50x32xf32> to vector<50x32xbf16>
    %c0_1 = arith.constant 0 : index
    %c0_2 = arith.constant 0 : index
    %8 = vector.load %arg4[%c0_1, %c0_2] : memref<110x32xf32, #tpu.memory_space<vmem>>, vector<110x32xf32>
    %9 = arith.truncf %8 : vector<110x32xf32> to vector<110x32xbf16>
    %10 = arith.extf %9 : vector<110x32xbf16> to vector<110x32xf32>
    %11 = arith.subf %8, %10 : vector<110x32xf32>
    %12 = arith.truncf %11 : vector<110x32xf32> to vector<110x32xbf16>
    %13 = arith.extf %12 : vector<110x32xbf16> to vector<110x32xf32>
    %14 = arith.subf %11, %13 : vector<110x32xf32>
    %15 = arith.truncf %14 : vector<110x32xf32> to vector<110x32xbf16>
    %c0_3 = arith.constant 0 : index
    %c0_4 = arith.constant 0 : index
    %16 = vector.load %arg1[%c0_3, %c0_4] : memref<8x4xi32, #tpu.memory_space<vmem>>, vector<8x4xi32>
    %c0_5 = arith.constant 0 : index
    %c0_6 = arith.constant 0 : index
    %c0_7 = arith.constant 0 : index
    %17 = vector.load %arg2[%c0_5, %c0_6, %c0_7] : memref<8x3x16xi32, #tpu.memory_space<vmem>>, vector<8x3x16xi32>
    %18 = tpu.iota {dimensions = array<i32: 1>} : vector<8x50xi32>
    %19 = vector.extract_strided_slice %16 {offsets = [0, 0], sizes = [8, 1], strides = [1, 1]} : vector<8x4xi32> to vector<8x1xi32>
    %20 = vector.broadcast %19 : vector<8x1xi32> to vector<8x50xi32>
    %21 = arith.cmpi eq, %18, %20 : vector<8x50xi32>
    %22 = arith.extui %21 : vector<8x50xi1> to vector<8x50xi32>
    %23 = arith.sitofp %22 : vector<8x50xi32> to vector<8x50xf32>
    %24 = arith.truncf %23 : vector<8x50xf32> to vector<8x50xbf16>
    %cst = arith.constant dense<0.000000e+00> : vector<8x32xf32>
    %25 = tpu.matmul %24, %1, %cst {dimension_numbers = #tpu.dot_dimension_numbers<[1], [0], [0], [1], [0, 0, 1, 1], [], []>} : vector<8x50xbf16>, vector<50x32xbf16>, vector<8x32xf32> -> vector<8x32xf32>
    %cst_8 = arith.constant dense<0.000000e+00> : vector<8x32xf32>
    %26 = tpu.matmul %24, %4, %cst_8 {dimension_numbers = #tpu.dot_dimension_numbers<[1], [0], [0], [1], [0, 0, 1, 1], [], []>} : vector<8x50xbf16>, vector<50x32xbf16>, vector<8x32xf32> -> vector<8x32xf32>
    %27 = arith.addf %25, %26 : vector<8x32xf32>
    %cst_9 = arith.constant dense<0.000000e+00> : vector<8x32xf32>
    %28 = tpu.matmul %24, %7, %cst_9 {dimension_numbers = #tpu.dot_dimension_numbers<[1], [0], [0], [1], [0, 0, 1, 1], [], []>} : vector<8x50xbf16>, vector<50x32xbf16>, vector<8x32xf32> -> vector<8x32xf32>
    %29 = arith.addf %27, %28 : vector<8x32xf32>
    %30 = tpu.iota {dimensions = array<i32: 1>} : vector<8x110xi32>
    %31 = vector.extract_strided_slice %16 {offsets = [0, 1], sizes = [8, 1], strides = [1, 1]} : vector<8x4xi32> to vector<8x1xi32>
    %32 = vector.broadcast %31 : vector<8x1xi32> to vector<8x110xi32>
    %33 = arith.cmpi eq, %30, %32 : vector<8x110xi32>
    %34 = arith.extui %33 : vector<8x110xi1> to vector<8x110xi32>
    %35 = arith.sitofp %34 : vector<8x110xi32> to vector<8x110xf32>
    %36 = vector.extract_strided_slice %16 {offsets = [0, 2], sizes = [8, 1], strides = [1, 1]} : vector<8x4xi32> to vector<8x1xi32>
    %37 = vector.broadcast %36 : vector<8x1xi32> to vector<8x110xi32>
    %38 = arith.cmpi eq, %30, %37 : vector<8x110xi32>
    %39 = arith.extui %38 : vector<8x110xi1> to vector<8x110xi32>
    %40 = arith.sitofp %39 : vector<8x110xi32> to vector<8x110xf32>
    %41 = arith.addf %35, %40 : vector<8x110xf32>
    %42 = vector.extract_strided_slice %16 {offsets = [0, 3], sizes = [8, 1], strides = [1, 1]} : vector<8x4xi32> to vector<8x1xi32>
    %43 = vector.broadcast %42 : vector<8x1xi32> to vector<8x110xi32>
    %44 = arith.cmpi eq, %30, %43 : vector<8x110xi32>
    %45 = arith.extui %44 : vector<8x110xi1> to vector<8x110xi32>
    %46 = arith.sitofp %45 : vector<8x110xi32> to vector<8x110xf32>
    %47 = arith.addf %41, %46 : vector<8x110xf32>
    %48 = arith.truncf %47 : vector<8x110xf32> to vector<8x110xbf16>
    %cst_10 = arith.constant dense<0.000000e+00> : vector<8x32xf32>
    %49 = tpu.matmul %48, %9, %cst_10 {dimension_numbers = #tpu.dot_dimension_numbers<[1], [0], [0], [1], [0, 0, 1, 1], [], []>} : vector<8x110xbf16>, vector<110x32xbf16>, vector<8x32xf32> -> vector<8x32xf32>
    %cst_11 = arith.constant dense<0.000000e+00> : vector<8x32xf32>
    %50 = tpu.matmul %48, %12, %cst_11 {dimension_numbers = #tpu.dot_dimension_numbers<[1], [0], [0], [1], [0, 0, 1, 1], [], []>} : vector<8x110xbf16>, vector<110x32xbf16>, vector<8x32xf32> -> vector<8x32xf32>
    %51 = arith.addf %49, %50 : vector<8x32xf32>
    %cst_12 = arith.constant dense<0.000000e+00> : vector<8x32xf32>
    %52 = tpu.matmul %48, %15, %cst_12 {dimension_numbers = #tpu.dot_dimension_numbers<[1], [0], [0], [1], [0, 0, 1, 1], [], []>} : vector<8x110xbf16>, vector<110x32xbf16>, vector<8x32xf32> -> vector<8x32xf32>
    %53 = arith.addf %51, %52 : vector<8x32xf32>
    %cst_13 = arith.constant 3.000000e+00 : f32
    %54 = vector.broadcast %cst_13 : f32 to vector<8x32xf32>
    %55 = arith.divf %53, %54 : vector<8x32xf32>
    %56 = arith.subf %29, %55 : vector<8x32xf32>
    %57 = arith.mulf %56, %56 : vector<8x32xf32>
    %cst_14 = arith.constant dense<0.000000e+00> : vector<8xf32>
    %58 = vector.multi_reduction <add>, %57, %cst_14 [1] : vector<8x32xf32> to vector<8xf32>
    %59 = vector.shape_cast %58 : vector<8xf32> to vector<8x1xf32>
    %60 = tpu.iota {dimensions = array<i32: 2>} : vector<8x16x110xi32>
    %61 = vector.extract_strided_slice %17 {offsets = [0, 0, 0], sizes = [8, 1, 16], strides = [1, 1, 1]} : vector<8x3x16xi32> to vector<8x1x16xi32>
    %62 = vector.shape_cast %61 : vector<8x1x16xi32> to vector<8x16xi32>
    %63 = vector.shape_cast %62 : vector<8x16xi32> to vector<8x16x1xi32>
    %64 = vector.broadcast %63 : vector<8x16x1xi32> to vector<8x16x110xi32>
    %65 = arith.cmpi eq, %60, %64 : vector<8x16x110xi32>
    %66 = arith.extui %65 : vector<8x16x110xi1> to vector<8x16x110xi32>
    %67 = arith.sitofp %66 : vector<8x16x110xi32> to vector<8x16x110xf32>
    %68 = vector.extract_strided_slice %17 {offsets = [0, 1, 0], sizes = [8, 1, 16], strides = [1, 1, 1]} : vector<8x3x16xi32> to vector<8x1x16xi32>
    %69 = vector.shape_cast %68 : vector<8x1x16xi32> to vector<8x16xi32>
    %70 = vector.shape_cast %69 : vector<8x16xi32> to vector<8x16x1xi32>
    %71 = vector.broadcast %70 : vector<8x16x1xi32> to vector<8x16x110xi32>
    %72 = arith.cmpi eq, %60, %71 : vector<8x16x110xi32>
    %73 = arith.extui %72 : vector<8x16x110xi1> to vector<8x16x110xi32>
    %74 = arith.sitofp %73 : vector<8x16x110xi32> to vector<8x16x110xf32>
    %75 = arith.addf %67, %74 : vector<8x16x110xf32>
    %76 = vector.extract_strided_slice %17 {offsets = [0, 2, 0], sizes = [8, 1, 16], strides = [1, 1, 1]} : vector<8x3x16xi32> to vector<8x1x16xi32>
    %77 = vector.shape_cast %76 : vector<8x1x16xi32> to vector<8x16xi32>
    %78 = vector.shape_cast %77 : vector<8x16xi32> to vector<8x16x1xi32>
    %79 = vector.broadcast %78 : vector<8x16x1xi32> to vector<8x16x110xi32>
    %80 = arith.cmpi eq, %60, %79 : vector<8x16x110xi32>
    %81 = arith.extui %80 : vector<8x16x110xi1> to vector<8x16x110xi32>
    %82 = arith.sitofp %81 : vector<8x16x110xi32> to vector<8x16x110xf32>
    %83 = arith.addf %75, %82 : vector<8x16x110xf32>
    %84 = arith.truncf %83 : vector<8x16x110xf32> to vector<8x16x110xbf16>
    %85 = vector.shape_cast %84 : vector<8x16x110xbf16> to vector<128x110xbf16>
    %cst_15 = arith.constant dense<0.000000e+00> : vector<128x32xf32>
    %86 = tpu.matmul %85, %9, %cst_15 {dimension_numbers = #tpu.dot_dimension_numbers<[1], [0], [0], [1], [0, 0, 1, 1], [], []>} : vector<128x110xbf16>, vector<110x32xbf16>, vector<128x32xf32> -> vector<128x32xf32>
    %cst_16 = arith.constant dense<0.000000e+00> : vector<128x32xf32>
    %87 = tpu.matmul %85, %12, %cst_16 {dimension_numbers = #tpu.dot_dimension_numbers<[1], [0], [0], [1], [0, 0, 1, 1], [], []>} : vector<128x110xbf16>, vector<110x32xbf16>, vector<128x32xf32> -> vector<128x32xf32>
    %88 = arith.addf %86, %87 : vector<128x32xf32>
    %cst_17 = arith.constant dense<0.000000e+00> : vector<128x32xf32>
    %89 = tpu.matmul %85, %15, %cst_17 {dimension_numbers = #tpu.dot_dimension_numbers<[1], [0], [0], [1], [0, 0, 1, 1], [], []>} : vector<128x110xbf16>, vector<110x32xbf16>, vector<128x32xf32> -> vector<128x32xf32>
    %90 = arith.addf %88, %89 : vector<128x32xf32>
    %91 = vector.shape_cast %90 : vector<128x32xf32> to vector<8x16x32xf32>
    %cst_18 = arith.constant 3.000000e+00 : f32
    %92 = vector.broadcast %cst_18 : f32 to vector<8x16x32xf32>
    %93 = arith.divf %91, %92 : vector<8x16x32xf32>
    %94 = vector.shape_cast %29 : vector<8x32xf32> to vector<8x1x32xf32>
    %95 = vector.broadcast %94 : vector<8x1x32xf32> to vector<8x16x32xf32>
    %96 = arith.subf %95, %93 : vector<8x16x32xf32>
    %97 = arith.mulf %96, %96 : vector<8x16x32xf32>
    %cst_19 = arith.constant dense<0.000000e+00> : vector<8x16xf32>
    %98 = vector.multi_reduction <add>, %97, %cst_19 [2] : vector<8x16x32xf32> to vector<8x16xf32>
    %cst_20 = arith.constant dense<0x7F800000> : vector<8xf32>
    %99 = vector.multi_reduction <minimumf>, %98, %cst_20 [1] : vector<8x16xf32> to vector<8xf32>
    %100 = vector.shape_cast %99 : vector<8xf32> to vector<8x1xf32>
    %101 = tpu.iota {dimensions = array<i32: 1>} : vector<8x128xi32>
    %c17_i32 = arith.constant 17 : i32
    %102 = vector.broadcast %c17_i32 : i32 to vector<8x128xi32>
    %103 = arith.cmpi eq, %101, %102 : vector<8x128xi32>
    %104 = vector.shape_cast %100 : vector<8x1xf32> to vector<8x1xf32>
    %105 = vector.broadcast %104 : vector<8x1xf32> to vector<8x128xf32>
    %106 = vector.shape_cast %59 : vector<8x1xf32> to vector<8x1xf32>
    %107 = vector.broadcast %106 : vector<8x1xf32> to vector<8x128xf32>
    %108 = arith.select %103, %105, %107 : vector<8x128xi1>, vector<8x128xf32>
    %c0_21 = arith.constant 0 : index
    %c0_22 = arith.constant 0 : index
    %109 = vector.load %arg5[%c0_21, %c0_22] : memref<8x128xf32, #tpu.memory_space<vmem>>, vector<8x128xf32>
    tpu.vector_store %arg5[%c0_21, %c0_22], %108 {strides = array<i32>} : memref<8x128xf32, #tpu.memory_space<vmem>>, vector<8x128xf32>,
    %c0_23 = arith.constant 0 : index
    %c0_24 = arith.constant 0 : index
    %110 = vector.load %arg5[%c0_23, %c0_24] : memref<8x128xf32, #tpu.memory_space<vmem>>, vector<8x16xf32>
    tpu.vector_store %arg5[%c0_23, %c0_24], %98 {strides = array<i32>} : memref<8x128xf32, #tpu.memory_space<vmem>>, vector<8x16xf32>,
    return
  }
  func.func @transform_0(%arg0: i32) -> (i32, i32) {
    %c0_i32 = arith.constant 0 : i32
    %c0_i32_0 = arith.constant 0 : i32
    return %arg0, %c0_i32 : i32, i32
  }
  func.func @transform_1(%arg0: i32) -> (i32, i32, i32) {
    %c0_i32 = arith.constant 0 : i32
    %c0_i32_0 = arith.constant 0 : i32
    %c0_i32_1 = arith.constant 0 : i32
    return %arg0, %c0_i32, %c0_i32_0 : i32, i32, i32
  }
  func.func @transform_2(%arg0: i32) -> (i32, i32) {
    %c0_i32 = arith.constant 0 : i32
    %c0_i32_0 = arith.constant 0 : i32
    %c0_i32_1 = arith.constant 0 : i32
    return %c0_i32, %c0_i32_0 : i32, i32
  }
  func.func @transform_3(%arg0: i32) -> (i32, i32) {
    %c0_i32 = arith.constant 0 : i32
    %c0_i32_0 = arith.constant 0 : i32
    %c0_i32_1 = arith.constant 0 : i32
    return %c0_i32, %c0_i32_0 : i32, i32
  }
  func.func @transform_4(%arg0: i32) -> (i32, i32) {
    %c0_i32 = arith.constant 0 : i32
    %c0_i32_0 = arith.constant 0 : i32
    return %arg0, %c0_i32 : i32, i32
  }
}

</mosaic_0001>

<llo_original>
// kernel: tpu_custom_call.1
$region0: #{tpu_custom_call.1}
  #allocation0 [shape = 'u32[]', space=smem, size = 0x4, offset = 0x4, fixed_abs, tag = 'smem constant byte address 0x4 - core index']
  #allocation1 [shape = 'u32[144,128]{1,0:T(1,128)}', space=vmem, size = 0x12000, scoped, tag = 'internal scratch']
  %s0 = inlined_call_operand.vmem [shape: s32[16,4], index: 0, kind: input, shape index: {}]
  %s1 = inlined_call_operand.vmem [shape: s32[16,3,16], index: 1, kind: input, shape index: {}]
  %s2 = inlined_call_operand.vmem [shape: f32[50,32], index: 2, kind: input, shape index: {}]
  %s3 = inlined_call_operand.vmem [shape: f32[110,32], index: 3, kind: input, shape index: {}]
  %s4 = inlined_call_operand.hbm [shape: f32[16,128], index: 4, kind: output, shape index: {}]
  %s5 = sld [smem:[#allocation0]]
  $region49: #{tpu_custom_call.1} parent=0
    _
  %s7 = ssub.s32 1, %s5
  %s8 = scalar_select 0, %s7, %s5
  $region1: #{tpu_custom_call.1} parent=0
    #allocation2 [shape = 'u8[8192]{0}', space=vmem, size = 0x2000, scoped, tag = 'output window, operand 0']
    #allocation3 [shape = 's32[2]{0}', space=sflag, size = 0x8, scoped, tag = 'scoped memory for tpu_custom_call.1']
    %9 = vsyncpa [#allocation3], 0
    %s10 = scalar_lea.sflag [#allocation3], 1
    %11 = vsyncpa %s10, 0
    loop: start=0, step=1, limit=4
    $region2: #{tpu_custom_call.1} parent=1 // loop_pre_header
      _
    $region3: #{tpu_custom_call.1} parent=1 // loop_header
      %s13 = sphi 0, %s17
      %p14 = scmp.ge.s32.totalorder %s13, 4
      %s23 = sphi 0, %s25
      %s26 = sphi 0, %s23
      %s27 = sphi 0, %s26
      %s43 = sphi 0, %s27
      %s49 = sphi 0, %s51
      %s52 = sphi 0, %s49
      %s53 = sphi 0, %s52
      %s69 = sphi 0, %s53
      %s73 = sphi 0, %s73
      %s75 = sphi 0, %s73
      %s76 = sphi 0, %s75
      %s90 = sphi 0, %s76
      %s94 = sphi 0, %s94
      %s96 = sphi 0, %s94
      %s97 = sphi 0, %s96
      %s111 = sphi 0, %s97
      %s117 = sphi 0, %s119
      %s120 = sphi 0, %s117
      %s121 = sphi 0, %s120
      %s137 = sphi 0, %s121
    $region4: #{tpu_custom_call.1} parent=1 // loop_header_branch
      %16 = sbr.rel (%p14) target = $region8
    $region5: #{tpu_custom_call.1} parent=1 // loop_body
      %s18 = ssub.s32 %s13, 1
      %s19 = ssub.s32 %s13, 2
      %s20 = sadd.s32 %s13, 1
      %s21 = ssub.s32 %s13, %s20
      %p22 = scmp.eq.s32.totalorder %s21, 0
      %s24 = sadd.s32 %s23, 1
      %s25 = scalar_select %p22, %s23, %s24
      %p28 = pneg %p22
      %p29 = scmp.eq.s32.totalorder %s13, 1
      %p30 = por %p28, %p29
      %p31 = scmp.ne.s32.totalorder %s23, %s26
      %p32 = scmp.eq.s32.totalorder %s13, 0
      %p33 = por %p31, %p32
      %p34 = scmp.ne.s32.totalorder %s23, %s26
      %p35 = scmp.eq.s32.totalorder %s18, 1
      %p36 = por %p34, %p35
      %p37 = scmp.ne.s32.totalorder %s26, %s27
      %p38 = scmp.eq.s32.totalorder %s18, 0
      %p39 = por %p37, %p38
      %p40 = scmp.ne.s32.totalorder %s26, %s27
      %p41 = scmp.eq.s32.totalorder %s19, 1
      %p42 = por %p40, %p41
      %p44 = scmp.ne.s32.totalorder %s27, %s43
      %p45 = scmp.eq.s32.totalorder %s19, 0
      %p46 = por %p44, %p45
      %s47 = ssub.s32 %s13, %s20
      %p48 = scmp.eq.s32.totalorder %s47, 0
      %s50 = sadd.s32 %s49, 1
      %s51 = scalar_select %p48, %s49, %s50
      %p54 = pneg %p48
      %p55 = scmp.eq.s32.totalorder %s13, 1
      %p56 = por %p54, %p55
      %p57 = scmp.ne.s32.totalorder %s49, %s52
      %p58 = scmp.eq.s32.totalorder %s13, 0
      %p59 = por %p57, %p58
      %p60 = scmp.ne.s32.totalorder %s49, %s52
      %p61 = scmp.eq.s32.totalorder %s18, 1
      %p62 = por %p60, %p61
      %p63 = scmp.ne.s32.totalorder %s52, %s53
      %p64 = scmp.eq.s32.totalorder %s18, 0
      %p65 = por %p63, %p64
      %p66 = scmp.ne.s32.totalorder %s52, %s53
      %p67 = scmp.eq.s32.totalorder %s19, 1
      %p68 = por %p66, %p67
      %p70 = scmp.ne.s32.totalorder %s53, %s69
      %p71 = scmp.eq.s32.totalorder %s19, 0
      %p72 = por %p70, %p71
      %s74 = sadd.s32 %s73, 1
      %p77 = scmp.eq.s32.totalorder %s13, 1
      %p78 = scmp.ne.s32.totalorder %s73, %s75
      %p79 = scmp.eq.s32.totalorder %s13, 0
      %p80 = por %p78, %p79
      %p81 = scmp.ne.s32.totalorder %s73, %s75
      %p82 = scmp.eq.s32.totalorder %s18, 1
      %p83 = por %p81, %p82
      %p84 = scmp.ne.s32.totalorder %s75, %s76
      %p85 = scmp.eq.s32.totalorder %s18, 0
      %p86 = por %p84, %p85
      %p87 = scmp.ne.s32.totalorder %s75, %s76
      %p88 = scmp.eq.s32.totalorder %s19, 1
      %p89 = por %p87, %p88
      %p91 = scmp.ne.s32.totalorder %s76, %s90
      %p92 = scmp.eq.s32.totalorder %s19, 0
      %p93 = por %p91, %p92
      %s95 = sadd.s32 %s94, 1
      %p98 = scmp.eq.s32.totalorder %s13, 1
      %p99 = scmp.ne.s32.totalorder %s94, %s96
      %p100 = scmp.eq.s32.totalorder %s13, 0
      %p101 = por %p99, %p100
      %p102 = scmp.ne.s32.totalorder %s94, %s96
      %p103 = scmp.eq.s32.totalorder %s18, 1
      %p104 = por %p102, %p103
      %p105 = scmp.ne.s32.totalorder %s96, %s97
      %p106 = scmp.eq.s32.totalorder %s18, 0
      %p107 = por %p105, %p106
      %p108 = scmp.ne.s32.totalorder %s96, %s97
      %p109 = scmp.eq.s32.totalorder %s19, 1
      %p110 = por %p108, %p109
      %p112 = scmp.ne.s32.totalorder %s97, %s111
      %p113 = scmp.eq.s32.totalorder %s19, 0
      %p114 = por %p112, %p113
      %s115 = ssub.s32 %s13, %s20
      %p116 = scmp.eq.s32.totalorder %s115, 0
      %s118 = sadd.s32 %s117, 1
      %s119 = scalar_select %p116, %s117, %s118
      %p122 = pneg %p116
      %p123 = scmp.eq.s32.totalorder %s13, 1
      %p124 = por %p122, %p123
      %p125 = scmp.ne.s32.totalorder %s117, %s120
      %p126 = scmp.eq.s32.totalorder %s13, 0
      %p127 = por %p125, %p126
      %p128 = scmp.ne.s32.totalorder %s117, %s120
      %p129 = scmp.eq.s32.totalorder %s18, 1
      %p130 = por %p128, %p129
      %p131 = scmp.ne.s32.totalorder %s120, %s121
      %p132 = scmp.eq.s32.totalorder %s18, 0
      %p133 = por %p131, %p132
      %p134 = scmp.ne.s32.totalorder %s120, %s121
      %p135 = scmp.eq.s32.totalorder %s19, 1
      %p136 = por %p134, %p135
      %p138 = scmp.ne.s32.totalorder %s121, %s137
      %p139 = scmp.eq.s32.totalorder %s19, 0
      %p140 = por %p138, %p139
      %p141 = scmp.le.s32.totalorder 1, %s13
      %p142 = scmp.lt.s32.totalorder %s13, 3
      %p143 = pnand %p141, %p142
      %p144 = pneg %p143
      // Predicated region
      $region9: #{tpu_custom_call.1} parent=5 // pred_check
        _
      $region10: #{tpu_custom_call.1} parent=5 // pred_check_branch
        %146 = sbr.rel (%p143) target = $region12
      $region11: #{tpu_custom_call.1} parent=5 // pred_region
        %s147 = ssub.s32 %s13, 1
        // Predicated region
        $region13: #{tpu_custom_call.1} parent=11 // pred_check
          %p148 = pneg %p86
        $region14: #{tpu_custom_call.1} parent=11 // pred_check_branch
          %150 = sbr.rel (%p148) target = $region16
        $region15: #{tpu_custom_call.1} parent=11 // pred_region
          _
        $region16: #{tpu_custom_call.1} parent=11 // pred_fallthru
          _
        // Predicated region
        $region17: #{tpu_custom_call.1} parent=11 // pred_check
          %p151 = pneg %p107
        $region18: #{tpu_custom_call.1} parent=11 // pred_check_branch
          %153 = sbr.rel (%p151) target = $region20
        $region19: #{tpu_custom_call.1} parent=11 // pred_region
          _
        $region20: #{tpu_custom_call.1} parent=11 // pred_fallthru
          _
      $region12: #{tpu_custom_call.1} parent=5 // pred_fallthru
        _
      %p154 = scmp.lt.s32.totalorder %s13, 2
      // Predicated region
      $region21: #{tpu_custom_call.1} parent=5 // pred_check
        %p155 = pneg %p154
      $region22: #{tpu_custom_call.1} parent=5 // pred_check_branch
        %157 = sbr.rel (%p155) target = $region24
      $region23: #{tpu_custom_call.1} parent=5 // pred_region
        // Predicated region
        $region25: #{tpu_custom_call.1} parent=23 // pred_check
          %p158 = pneg %p33
        $region26: #{tpu_custom_call.1} parent=23 // pred_check_branch
          %160 = sbr.rel (%p158) target = $region28
        $region27: #{tpu_custom_call.1} parent=23 // pred_region
          %p161 = scmp.lt.s32.totalorder %s13, 1
          %s162 = scalar_select %p161, %s13, 1
          %s163 = smul.addr %s162, 8
          %s164 = scalar_lea.vmem %s0, %s163
        $region28: #{tpu_custom_call.1} parent=23 // pred_fallthru
          _
        // Predicated region
        $region29: #{tpu_custom_call.1} parent=23 // pred_check
          %p165 = pneg %p59
        $region30: #{tpu_custom_call.1} parent=23 // pred_check_branch
          %167 = sbr.rel (%p165) target = $region32
        $region31: #{tpu_custom_call.1} parent=23 // pred_region
          %s168 = smul.u32 8, %s13
          %p169 = scmp.lt.s32.totalorder %s168, 15
          %s170 = scalar_select %p169, %s168, 15
          %s171 = smul.addr %s170, 4
          %s172 = scalar_lea.vmem %s1, %s171
          %s173 = smul.u32 8, %s13
        $region32: #{tpu_custom_call.1} parent=23 // pred_fallthru
          _
      $region24: #{tpu_custom_call.1} parent=5 // pred_fallthru
        _
      %p174 = scmp.le.s32.totalorder 1, %s13
      %p175 = scmp.lt.s32.totalorder %s13, 3
      %p176 = pnand %p174, %p175
      %p177 = pneg %p176
      // Predicated region
      $region33: #{tpu_custom_call.1} parent=5 // pred_check
        _
      $region34: #{tpu_custom_call.1} parent=5 // pred_check_branch
        %179 = sbr.rel (%p176) target = $region36
      $region35: #{tpu_custom_call.1} parent=5 // pred_region
        %s180 = ssub.s32 %s13, 1
        %p181 = scmp.lt.s32.totalorder %s18, 1
        %s182 = scalar_select %p181, %s18, 1
        %s183 = smul.addr %s182, 8
        %s184 = scalar_lea.vmem %s0, %s183
        %p185 = pneg %p39
        %p186 = pneg %p36
        %s187 = smul.u32 8, %s18
        %p188 = scmp.lt.s32.totalorder %s187, 15
        %s189 = scalar_select %p188, %s187, 15
        %s190 = smul.addr %s189, 4
        %s191 = scalar_lea.vmem %s1, %s190
        %p192 = pneg %p65
        %p193 = pneg %p62
        %p194 = pneg %p86
        %p195 = pneg %p83
        %p196 = pneg %p107
        %p197 = pneg %p104
        %p198 = pneg %p133
        %p199 = pneg %p130
        %s200 = sand.u32 %s120, 1
        %s201 = scalar_lea.sflag [#allocation3], %s200
        %s202 = sand.u32 %s120, 1
        %s203 = smul.addr %s202, 8
        %s204 = scalar_lea.vmem [#allocation2], %s203
        %p205 = scmp.lt.s32.totalorder %s18, 1
        %s206 = scalar_select %p205, %s18, 1
        %s207 = smul.addr %s206, 8
        %s208 = scalar_lea.vmem %s0, %s207
        %s209 = smul.u32 8, %s18
        %p210 = scmp.lt.s32.totalorder %s209, 15
        %s211 = scalar_select %p210, %s209, 15
        %s212 = smul.addr %s211, 4
        %s213 = scalar_lea.vmem %s1, %s212
        %s214 = smul.u32 8, %s18
        %v216 = vld [vmem:[%s2] sm:$0xff]
        %v217 = vld [vmem:[%s2 + $0x8] sm:$0xff]
        %v218 = vld [vmem:[%s2 + $0x10] sm:$0xff]
        %v219 = vld [vmem:[%s2 + $0x18] sm:$0xff]
        %v220 = vld [vmem:[%s2 + $0x20] sm:$0xff]
        %v221 = vld [vmem:[%s2 + $0x28] sm:$0xff]
        %v222 = vld [vmem:[%s2 + $0x30] sm:$0x3]
        %v223 = vpack.c.bf16 %v217, %v216
        %v224 = vpack.c.bf16 %v219, %v218
        %v225 = vpack.c.bf16 %v221, %v220
        %v226 = vpack.c.bf16 %v222, %v222
        %v227 = vunpack.c.l.bf16 %v223
        %v228 = vunpack.c.h.bf16 %v223
        %v229 = vunpack.c.l.bf16 %v224
        %v230 = vunpack.c.h.bf16 %v224
        %v231 = vunpack.c.l.bf16 %v225
        %v232 = vunpack.c.h.bf16 %v225
        %v233 = vunpack.c.l.bf16 %v226
        %v234 = vsub.f32 %v216, %v227
        %v235 = vsub.f32 %v217, %v228
        %v236 = vsub.f32 %v218, %v229
        %v237 = vsub.f32 %v219, %v230
        %v238 = vsub.f32 %v220, %v231
        %v239 = vsub.f32 %v221, %v232
        %v240 = vsub.f32 %v222, %v233
        %v241 = vpack.c.bf16 %v235, %v234
        %v242 = vpack.c.bf16 %v237, %v236
        %v243 = vpack.c.bf16 %v239, %v238
        %v244 = vpack.c.bf16 %v240, %v240
        %v245 = vunpack.c.l.bf16 %v241
        %v246 = vunpack.c.h.bf16 %v241
        %v247 = vunpack.c.l.bf16 %v242
        %v248 = vunpack.c.h.bf16 %v242
        %v249 = vunpack.c.l.bf16 %v243
        %v250 = vunpack.c.h.bf16 %v243
        %v251 = vunpack.c.l.bf16 %v244
        %v252 = vsub.f32 %v234, %v245
        %v253 = vsub.f32 %v235, %v246
        %v254 = vsub.f32 %v236, %v247
        %v255 = vsub.f32 %v237, %v248
        %v256 = vsub.f32 %v238, %v249
        %v257 = vsub.f32 %v239, %v250
        %v258 = vsub.f32 %v240, %v251
        %v259 = vpack.c.bf16 %v253, %v252
        %v260 = vpack.c.bf16 %v255, %v254
        %v261 = vpack.c.bf16 %v257, %v256
        %v262 = vpack.c.bf16 %v258, %v258
        %v263 = vld [vmem:[%s3] sm:$0xff]
        %v264 = vld [vmem:[%s3 + $0x8] sm:$0xff]
        %v265 = vld [vmem:[%s3 + $0x10] sm:$0xff]
        %v266 = vld [vmem:[%s3 + $0x18] sm:$0xff]
        %v267 = vld [vmem:[%s3 + $0x20] sm:$0xff]
        %v268 = vld [vmem:[%s3 + $0x28] sm:$0xff]
        %v269 = vld [vmem:[%s3 + $0x30] sm:$0xff]
        %v270 = vld [vmem:[%s3 + $0x38] sm:$0xff]
        %v271 = vld [vmem:[%s3 + $0x40] sm:$0xff]
        %v272 = vld [vmem:[%s3 + $0x48] sm:$0xff]
        %v273 = vld [vmem:[%s3 + $0x50] sm:$0xff]
        %v274 = vld [vmem:[%s3 + $0x58] sm:$0xff]
        %v275 = vld [vmem:[%s3 + $0x60] sm:$0xff]
        %v276 = vld [vmem:[%s3 + $0x68] sm:$0x3f]
        %v277 = vpack.c.bf16 %v264, %v263
        %v278 = vpack.c.bf16 %v266, %v265
        %v279 = vpack.c.bf16 %v268, %v267
        %v280 = vpack.c.bf16 %v270, %v269
        %v281 = vpack.c.bf16 %v272, %v271
        %v282 = vpack.c.bf16 %v274, %v273
        %v283 = vpack.c.bf16 %v276, %v275
        %v284 = vunpack.c.l.bf16 %v277
        %v285 = vunpack.c.h.bf16 %v277
        %v286 = vunpack.c.l.bf16 %v278
        %v287 = vunpack.c.h.bf16 %v278
        %v288 = vunpack.c.l.bf16 %v279
        %v289 = vunpack.c.h.bf16 %v279
        %v290 = vunpack.c.l.bf16 %v280
        %v291 = vunpack.c.h.bf16 %v280
        %v292 = vunpack.c.l.bf16 %v281
        %v293 = vunpack.c.h.bf16 %v281
        %v294 = vunpack.c.l.bf16 %v282
        %v295 = vunpack.c.h.bf16 %v282
        %v296 = vunpack.c.l.bf16 %v283
        %v297 = vunpack.c.h.bf16 %v283
        %v298 = vsub.f32 %v263, %v284
        %v299 = vsub.f32 %v264, %v285
        %v300 = vsub.f32 %v265, %v286
        %v301 = vsub.f32 %v266, %v287
        %v302 = vsub.f32 %v267, %v288
        %v303 = vsub.f32 %v268, %v289
        %v304 = vsub.f32 %v269, %v290
        %v305 = vsub.f32 %v270, %v291
        %v306 = vsub.f32 %v271, %v292
        %v307 = vsub.f32 %v272, %v293
        %v308 = vsub.f32 %v273, %v294
        %v309 = vsub.f32 %v274, %v295
        %v310 = vsub.f32 %v275, %v296
        %v311 = vsub.f32 %v276, %v297
        %v312 = vpack.c.bf16 %v299, %v298
        %v313 = vpack.c.bf16 %v301, %v300
        %v314 = vpack.c.bf16 %v303, %v302
        %v315 = vpack.c.bf16 %v305, %v304
        %v316 = vpack.c.bf16 %v307, %v306
        %v317 = vpack.c.bf16 %v309, %v308
        %v318 = vpack.c.bf16 %v311, %v310
        %v319 = vunpack.c.l.bf16 %v312
        %v320 = vunpack.c.h.bf16 %v312
        %v321 = vunpack.c.l.bf16 %v313
        %v322 = vunpack.c.h.bf16 %v313
        %v323 = vunpack.c.l.bf16 %v314
        %v324 = vunpack.c.h.bf16 %v314
        %v325 = vunpack.c.l.bf16 %v315
        %v326 = vunpack.c.h.bf16 %v315
        %v327 = vunpack.c.l.bf16 %v316
        %v328 = vunpack.c.h.bf16 %v316
        %v329 = vunpack.c.l.bf16 %v317
        %v330 = vunpack.c.h.bf16 %v317
        %v331 = vunpack.c.l.bf16 %v318
        %v332 = vunpack.c.h.bf16 %v318
        %v333 = vsub.f32 %v298, %v319
        %v334 = vsub.f32 %v299, %v320
        %v335 = vsub.f32 %v300, %v321
        %v336 = vsub.f32 %v301, %v322
        %v337 = vsub.f32 %v302, %v323
        %v338 = vsub.f32 %v303, %v324
        %v339 = vsub.f32 %v304, %v325
        %v340 = vsub.f32 %v305, %v326
        %v341 = vsub.f32 %v306, %v327
        %v342 = vsub.f32 %v307, %v328
        %v343 = vsub.f32 %v308, %v329
        %v344 = vsub.f32 %v309, %v330
        %v345 = vsub.f32 %v310, %v331
        %v346 = vsub.f32 %v311, %v332
        %v347 = vpack.c.bf16 %v334, %v333
        %v348 = vpack.c.bf16 %v336, %v335
        %v349 = vpack.c.bf16 %v338, %v337
        %v350 = vpack.c.bf16 %v340, %v339
        %v351 = vpack.c.bf16 %v342, %v341
        %v352 = vpack.c.bf16 %v344, %v343
        %v353 = vpack.c.bf16 %v346, %v345
        %v354 = vld [vmem:[%s208] sm:$0xff]
        %v355 = vld [vmem:[%s213] sm:$0x7]
        %v356 = vld [vmem:[%s213 + $0x4] sm:$0x7]
        %v357 = vld [vmem:[%s213 + $0x8] sm:$0x7]
        %v358 = vld [vmem:[%s213 + $0xc] sm:$0x7]
        %v359 = vld [vmem:[%s213 + $0x10] sm:$0x7]
        %v360 = vld [vmem:[%s213 + $0x14] sm:$0x7]
        %v361 = vld [vmem:[%s213 + $0x18] sm:$0x7]
        %v362 = vld [vmem:[%s213 + $0x1c] sm:$0x7]
        %v363 = vlaneseq
        %v364 = vand.u32 %v363, 127
        %365 = vset.pattern.permute.xlu0 0
        %366 = vperm.xlu0 %365, %v354
        %v367 = vpop.permute.xlu0 %366
        %vm368 = vcmp.eq.s32.totalorder %v364, %v367
        %v369 = vsel %vm368, 1, 0
        %v370 = vcvt.s32.f32 %v369
        %v371 = vpack.c.bf16 %v370, %v370
        %vm372 = vcmask 408576
        %v374 = vsel %vm372, %v371, 0
        %vm376 = vcmask 1040384
        %v378 = vsel %vm376, %v244, 0
        %380 = vmatprep.subr.bf16.mxu0 0
        %381 = vmatpush1.bf16.msra.mxu0 0
        %382 = vmatprep.subr.bf16.mxu0 0
        %383 = vmatpush1.bf16.msra.mxu0 0
        %384 = vmatprep.subr.bf16.mxu0 0
        %385 = vmatpush1.bf16.msra.mxu0 0
        %386 = vmatprep.subr.bf16.mxu0 0
        %387 = vmatpush1.bf16.msra.mxu0 0
        %388 = vmatprep.subr.bf16.mxu0 0
        %389 = vmatpush1.bf16.msra.mxu0 %v378
        %390 = vmatprep.subr.bf16.mxu0 0
        %391 = vmatpush1.bf16.msra.mxu0 %v243
        %392 = vmatprep.subr.bf16.mxu0 0
        %393 = vmatpush1.bf16.msra.mxu0 %v242
        %394 = vmatprep.subr.bf16.mxu0 0
        %395 = vmatpush1.bf16.msra.mxu0 %v241
        %396 = vmatprep.subr.bf16.mxu0 0
        %397 = vmatpush2.bf16.msra.mxu0 0
        %398 = vmatprep.subr.bf16.mxu0 0
        %399 = vmatpush2.bf16.msra.mxu0 0
        %400 = vmatprep.subr.bf16.mxu0 0
        %401 = vmatpush2.bf16.msra.mxu0 0
        %402 = vmatprep.subr.bf16.mxu0 0
        %403 = vmatpush2.bf16.msra.mxu0 0
        %404 = vmatprep.subr.bf16.mxu0 0
        %405 = vmatpush2.bf16.msra.mxu0 0
        %406 = vmatprep.subr.bf16.mxu0 0
        %407 = vmatpush2.bf16.msra.mxu0 0
        %408 = vmatprep.subr.bf16.mxu0 0
        %409 = vmatpush2.bf16.msra.mxu0 0
        %410 = vmatprep.subr.bf16.mxu0 0
        %411 = vmatpush2.bf16.msra.mxu0 0
        %412 = vmatprep.mubr.bf16.mxu0 0
        %413 = vmatmul.mubr.bf16.gmra.mxu0 %v374
        %v414 = vpop.f32.mrf.mxu0
        %v415 = vadd.f32 0.0, %v414
        %v416 = vpop.f32.mrf.mxu0
        %v417 = vpop.f32.mrf.mxu0
        %v418 = vpop.f32.mrf.mxu0
        %419 = vdwg.mxu0
        %v421 = vsel %vm376, %v226, 0
        %423 = vmatprep.subr.bf16.mxu0 0
        %424 = vmatpush1.bf16.msra.mxu0 0
        %425 = vmatprep.subr.bf16.mxu0 0
        %426 = vmatpush1.bf16.msra.mxu0 0
        %427 = vmatprep.subr.bf16.mxu0 0
        %428 = vmatpush1.bf16.msra.mxu0 0
        %429 = vmatprep.subr.bf16.mxu0 0
        %430 = vmatpush1.bf16.msra.mxu0 0
        %431 = vmatprep.subr.bf16.mxu0 0
        %432 = vmatpush1.bf16.msra.mxu0 %v421
        %433 = vmatprep.subr.bf16.mxu0 0
        %434 = vmatpush1.bf16.msra.mxu0 %v225
        %435 = vmatprep.subr.bf16.mxu0 0
        %436 = vmatpush1.bf16.msra.mxu0 %v224
        %437 = vmatprep.subr.bf16.mxu0 0
        %438 = vmatpush1.bf16.msra.mxu0 %v223
        %439 = vmatprep.subr.bf16.mxu0 0
        %440 = vmatpush2.bf16.msra.mxu0 0
        %441 = vmatprep.subr.bf16.mxu0 0
        %442 = vmatpush2.bf16.msra.mxu0 0
        %443 = vmatprep.subr.bf16.mxu0 0
        %444 = vmatpush2.bf16.msra.mxu0 0
        %445 = vmatprep.subr.bf16.mxu0 0
        %446 = vmatpush2.bf16.msra.mxu0 0
        %447 = vmatprep.subr.bf16.mxu0 0
        %448 = vmatpush2.bf16.msra.mxu0 0
        %449 = vmatprep.subr.bf16.mxu0 0
        %450 = vmatpush2.bf16.msra.mxu0 0
        %451 = vmatprep.subr.bf16.mxu0 0
        %452 = vmatpush2.bf16.msra.mxu0 0
        %453 = vmatprep.subr.bf16.mxu0 0
        %454 = vmatpush2.bf16.msra.mxu0 0
        %455 = vmatprep.mubr.bf16.mxu0 0
        %456 = vmatmul.mubr.bf16.gmra.mxu0 %v374
        %v457 = vpop.f32.mrf.mxu0
        %v458 = vadd.f32 %v415, %v457
        %v459 = vpop.f32.mrf.mxu0
        %v460 = vpop.f32.mrf.mxu0
        %v461 = vpop.f32.mrf.mxu0
        %462 = vdwg.mxu0
        %v464 = vsel %vm376, %v262, 0
        %466 = vmatprep.subr.bf16.mxu0 0
        %467 = vmatpush1.bf16.msra.mxu0 0
        %468 = vmatprep.subr.bf16.mxu0 0
        %469 = vmatpush1.bf16.msra.mxu0 0
        %470 = vmatprep.subr.bf16.mxu0 0
        %471 = vmatpush1.bf16.msra.mxu0 0
        %472 = vmatprep.subr.bf16.mxu0 0
        %473 = vmatpush1.bf16.msra.mxu0 0
        %474 = vmatprep.subr.bf16.mxu0 0
        %475 = vmatpush1.bf16.msra.mxu0 %v464
        %476 = vmatprep.subr.bf16.mxu0 0
        %477 = vmatpush1.bf16.msra.mxu0 %v261
        %478 = vmatprep.subr.bf16.mxu0 0
        %479 = vmatpush1.bf16.msra.mxu0 %v260
        %480 = vmatprep.subr.bf16.mxu0 0
        %481 = vmatpush1.bf16.msra.mxu0 %v259
        %482 = vmatprep.subr.bf16.mxu0 0
        %483 = vmatpush2.bf16.msra.mxu0 0
        %484 = vmatprep.subr.bf16.mxu0 0
        %485 = vmatpush2.bf16.msra.mxu0 0
        %486 = vmatprep.subr.bf16.mxu0 0
        %487 = vmatpush2.bf16.msra.mxu0 0
        %488 = vmatprep.subr.bf16.mxu0 0
        %489 = vmatpush2.bf16.msra.mxu0 0
        %490 = vmatprep.subr.bf16.mxu0 0
        %491 = vmatpush2.bf16.msra.mxu0 0
        %492 = vmatprep.subr.bf16.mxu0 0
        %493 = vmatpush2.bf16.msra.mxu0 0
        %494 = vmatprep.subr.bf16.mxu0 0
        %495 = vmatpush2.bf16.msra.mxu0 0
        %496 = vmatprep.subr.bf16.mxu0 0
        %497 = vmatpush2.bf16.msra.mxu0 0
        %498 = vmatprep.mubr.bf16.mxu0 0
        %499 = vmatmul.mubr.bf16.gmra.mxu0 %v374
        %v500 = vpop.f32.mrf.mxu0
        %v501 = vadd.f32 0.0, %v500
        %v502 = vpop.f32.mrf.mxu0
        %v503 = vpop.f32.mrf.mxu0
        %v504 = vpop.f32.mrf.mxu0
        %505 = vdwg.mxu0
        %v506 = vadd.f32 %v458, %v501
        %507 = vset.pattern.permute.xlu0 1
        %508 = vperm.xlu0 %507, %v354
        %v509 = vpop.permute.xlu0 %508
        %vm510 = vcmp.eq.s32.totalorder %v364, %v509
        %v511 = vsel %vm510, 1, 0
        %v512 = vcvt.s32.f32 %v511
        %513 = vset.pattern.permute.xlu0 2
        %514 = vperm.xlu0 %513, %v354
        %v515 = vpop.permute.xlu0 %514
        %vm516 = vcmp.eq.s32.totalorder %v364, %v515
        %v517 = vsel %vm516, 1, 0
        %v518 = vcvt.s32.f32 %v517
        %v519 = vadd.f32 %v512, %v518
        %520 = vset.pattern.permute.xlu0 3
        %521 = vperm.xlu0 %520, %v354
        %v522 = vpop.permute.xlu0 %521
        %vm523 = vcmp.eq.s32.totalorder %v364, %v522
        %v524 = vsel %vm523, 1, 0
        %v525 = vcvt.s32.f32 %v524
        %v526 = vadd.f32 %v519, %v525
        %v527 = vpack.c.bf16 %v526, %v526
        %vm528 = vcmask 900096
        %v530 = vsel %vm528, %v527, 0
        %vm532 = vcmask 1046528
        %v534 = vsel %vm532, %v318, 0
        %536 = vmatprep.subr.bf16.mxu0 0
        %537 = vmatpush1.bf16.msra.mxu0 0
        %538 = vmatprep.subr.bf16.mxu0 0
        %539 = vmatpush1.bf16.msra.mxu0 %v534
        %540 = vmatprep.subr.bf16.mxu0 0
        %541 = vmatpush1.bf16.msra.mxu0 %v317
        %542 = vmatprep.subr.bf16.mxu0 0
        %543 = vmatpush1.bf16.msra.mxu0 %v316
        %544 = vmatprep.subr.bf16.mxu0 0
        %545 = vmatpush1.bf16.msra.mxu0 %v315
        %546 = vmatprep.subr.bf16.mxu0 0
        %547 = vmatpush1.bf16.msra.mxu0 %v314
        %548 = vmatprep.subr.bf16.mxu0 0
        %549 = vmatpush1.bf16.msra.mxu0 %v313
        %550 = vmatprep.subr.bf16.mxu0 0
        %551 = vmatpush1.bf16.msra.mxu0 %v312
        %552 = vmatprep.subr.bf16.mxu0 0
        %553 = vmatpush2.bf16.msra.mxu0 0
        %554 = vmatprep.subr.bf16.mxu0 0
        %555 = vmatpush2.bf16.msra.mxu0 0
        %556 = vmatprep.subr.bf16.mxu0 0
        %557 = vmatpush2.bf16.msra.mxu0 0
        %558 = vmatprep.subr.bf16.mxu0 0
        %559 = vmatpush2.bf16.msra.mxu0 0
        %560 = vmatprep.subr.bf16.mxu0 0
        %561 = vmatpush2.bf16.msra.mxu0 0
        %562 = vmatprep.subr.bf16.mxu0 0
        %563 = vmatpush2.bf16.msra.mxu0 0
        %564 = vmatprep.subr.bf16.mxu0 0
        %565 = vmatpush2.bf16.msra.mxu0 0
        %566 = vmatprep.subr.bf16.mxu0 0
        %567 = vmatpush2.bf16.msra.mxu0 0
        %568 = vmatprep.mubr.bf16.mxu0 0
        %569 = vmatmul.mubr.bf16.gmra.mxu0 %v530
        %v570 = vpop.f32.mrf.mxu0
        %v571 = vadd.f32 0.0, %v570
        %v572 = vpop.f32.mrf.mxu0
        %v573 = vpop.f32.mrf.mxu0
        %v574 = vpop.f32.mrf.mxu0
        %575 = vdwg.mxu0
        %v577 = vsel %vm532, %v283, 0
        %579 = vmatprep.subr.bf16.mxu0 0
        %580 = vmatpush1.bf16.msra.mxu0 0
        %581 = vmatprep.subr.bf16.mxu0 0
        %582 = vmatpush1.bf16.msra.mxu0 %v577
        %583 = vmatprep.subr.bf16.mxu0 0
        %584 = vmatpush1.bf16.msra.mxu0 %v282
        %585 = vmatprep.subr.bf16.mxu0 0
        %586 = vmatpush1.bf16.msra.mxu0 %v281
        %587 = vmatprep.subr.bf16.mxu0 0
        %588 = vmatpush1.bf16.msra.mxu0 %v280
        %589 = vmatprep.subr.bf16.mxu0 0
        %590 = vmatpush1.bf16.msra.mxu0 %v279
        %591 = vmatprep.subr.bf16.mxu0 0
        %592 = vmatpush1.bf16.msra.mxu0 %v278
        %593 = vmatprep.subr.bf16.mxu0 0
        %594 = vmatpush1.bf16.msra.mxu0 %v277
        %595 = vmatprep.subr.bf16.mxu0 0
        %596 = vmatpush2.bf16.msra.mxu0 0
        %597 = vmatprep.subr.bf16.mxu0 0
        %598 = vmatpush2.bf16.msra.mxu0 0
        %599 = vmatprep.subr.bf16.mxu0 0
        %600 = vmatpush2.bf16.msra.mxu0 0
        %601 = vmatprep.subr.bf16.mxu0 0
        %602 = vmatpush2.bf16.msra.mxu0 0
        %603 = vmatprep.subr.bf16.mxu0 0
        %604 = vmatpush2.bf16.msra.mxu0 0
        %605 = vmatprep.subr.bf16.mxu0 0
        %606 = vmatpush2.bf16.msra.mxu0 0
        %607 = vmatprep.subr.bf16.mxu0 0
        %608 = vmatpush2.bf16.msra.mxu0 0
        %609 = vmatprep.subr.bf16.mxu0 0
        %610 = vmatpush2.bf16.msra.mxu0 0
        %611 = vmatprep.mubr.bf16.mxu0 0
        %612 = vmatmul.mubr.bf16.gmra.mxu0 %v530
        %v613 = vpop.f32.mrf.mxu0
        %v614 = vadd.f32 %v571, %v613
        %v615 = vpop.f32.mrf.mxu0
        %v616 = vpop.f32.mrf.mxu0
        %v617 = vpop.f32.mrf.mxu0
        %618 = vdwg.mxu0
        %v620 = vsel %vm532, %v353, 0
        %622 = vmatprep.subr.bf16.mxu0 0
        %623 = vmatpush1.bf16.msra.mxu0 0
        %624 = vmatprep.subr.bf16.mxu0 0
        %625 = vmatpush1.bf16.msra.mxu0 %v620
        %626 = vmatprep.subr.bf16.mxu0 0
        %627 = vmatpush1.bf16.msra.mxu0 %v352
        %628 = vmatprep.subr.bf16.mxu0 0
        %629 = vmatpush1.bf16.msra.mxu0 %v351
        %630 = vmatprep.subr.bf16.mxu0 0
        %631 = vmatpush1.bf16.msra.mxu0 %v350
        %632 = vmatprep.subr.bf16.mxu0 0
        %633 = vmatpush1.bf16.msra.mxu0 %v349
        %634 = vmatprep.subr.bf16.mxu0 0
        %635 = vmatpush1.bf16.msra.mxu0 %v348
        %636 = vmatprep.subr.bf16.mxu0 0
        %637 = vmatpush1.bf16.msra.mxu0 %v347
        %638 = vmatprep.subr.bf16.mxu0 0
        %639 = vmatpush2.bf16.msra.mxu0 0
        %640 = vmatprep.subr.bf16.mxu0 0
        %641 = vmatpush2.bf16.msra.mxu0 0
        %642 = vmatprep.subr.bf16.mxu0 0
        %643 = vmatpush2.bf16.msra.mxu0 0
        %644 = vmatprep.subr.bf16.mxu0 0
        %645 = vmatpush2.bf16.msra.mxu0 0
        %646 = vmatprep.subr.bf16.mxu0 0
        %647 = vmatpush2.bf16.msra.mxu0 0
        %648 = vmatprep.subr.bf16.mxu0 0
        %649 = vmatpush2.bf16.msra.mxu0 0
        %650 = vmatprep.subr.bf16.mxu0 0
        %651 = vmatpush2.bf16.msra.mxu0 0
        %652 = vmatprep.subr.bf16.mxu0 0
        %653 = vmatpush2.bf16.msra.mxu0 0
        %654 = vmatprep.mubr.bf16.mxu0 0
        %655 = vmatmul.mubr.bf16.gmra.mxu0 %v530
        %v656 = vpop.f32.mrf.mxu0
        %v657 = vadd.f32 0.0, %v656
        %v658 = vpop.f32.mrf.mxu0
        %v659 = vpop.f32.mrf.mxu0
        %v660 = vpop.f32.mrf.mxu0
        %661 = vdwg.mxu0
        %v662 = vadd.f32 %v614, %v657
        %v663 = vrcp.pop 3.0
        %v664 = vmul.f32 %v662, %v663
        %v665 = vsub.f32 %v506, %v664
        %v666 = vmul.f32 %v665, %v665
        %vm667 = vcmask 261120
        %v668 = vsel %vm667, %v666, 0.0
        %669 = vadd.xlane.f32.xlu0 %v668
        %v670 = vpop.xlane.xlu0 %669
        %v671 = vlaneseq
        %v672 = vshrl.u32 %v671, 7
        %v673 = vsub.s32 0, %v672
        %v674 = vrot.slane %v355, %v673
        %676 = vbcast.lane.b32.xlu0 %v674, 256
        %v677 = vpop.permute.xlu0 %676
        %s679 = sor.u32 256, 8
        %680 = vbcast.lane.b32.xlu0 %v674, %s679
        %v681 = vpop.permute.xlu0 %680
        %v682 = vlaneseq
        %v683 = vshrl.u32 %v682, 7
        %v684 = vsub.s32 0, %v683
        %v685 = vrot.slane %v356, %v684
        %687 = vbcast.lane.b32.xlu0 %v685, 256
        %v688 = vpop.permute.xlu0 %687
        %s690 = sor.u32 256, 8
        %691 = vbcast.lane.b32.xlu0 %v685, %s690
        %v692 = vpop.permute.xlu0 %691
        %v693 = vlaneseq
        %v694 = vshrl.u32 %v693, 7
        %v695 = vsub.s32 0, %v694
        %v696 = vrot.slane %v357, %v695
        %698 = vbcast.lane.b32.xlu0 %v696, 256
        %v699 = vpop.permute.xlu0 %698
        %s701 = sor.u32 256, 8
        %702 = vbcast.lane.b32.xlu0 %v696, %s701
        %v703 = vpop.permute.xlu0 %702
        %v704 = vlaneseq
        %v705 = vshrl.u32 %v704, 7
        %v706 = vsub.s32 0, %v705
        %v707 = vrot.slane %v358, %v706
        %709 = vbcast.lane.b32.xlu0 %v707, 256
        %v710 = vpop.permute.xlu0 %709
        %s712 = sor.u32 256, 8
        %713 = vbcast.lane.b32.xlu0 %v707, %s712
        %v714 = vpop.permute.xlu0 %713
        %v715 = vlaneseq
        %v716 = vshrl.u32 %v715, 7
        %v717 = vsub.s32 0, %v716
        %v718 = vrot.slane %v359, %v717
        %720 = vbcast.lane.b32.xlu0 %v718, 256
        %v721 = vpop.permute.xlu0 %720
        %s723 = sor.u32 256, 8
        %724 = vbcast.lane.b32.xlu0 %v718, %s723
        %v725 = vpop.permute.xlu0 %724
        %v726 = vlaneseq
        %v727 = vshrl.u32 %v726, 7
        %v728 = vsub.s32 0, %v727
        %v729 = vrot.slane %v360, %v728
        %731 = vbcast.lane.b32.xlu0 %v729, 256
        %v732 = vpop.permute.xlu0 %731
        %s734 = sor.u32 256, 8
        %735 = vbcast.lane.b32.xlu0 %v729, %s734
        %v736 = vpop.permute.xlu0 %735
        %v737 = vlaneseq
        %v738 = vshrl.u32 %v737, 7
        %v739 = vsub.s32 0, %v738
        %v740 = vrot.slane %v361, %v739
        %742 = vbcast.lane.b32.xlu0 %v740, 256
        %v743 = vpop.permute.xlu0 %742
        %s745 = sor.u32 256, 8
        %746 = vbcast.lane.b32.xlu0 %v740, %s745
        %v747 = vpop.permute.xlu0 %746
        %v748 = vlaneseq
        %v749 = vshrl.u32 %v748, 7
        %v750 = vsub.s32 0, %v749
        %v751 = vrot.slane %v362, %v750
        %753 = vbcast.lane.b32.xlu0 %v751, 256
        %v754 = vpop.permute.xlu0 %753
        %s756 = sor.u32 256, 8
        %757 = vbcast.lane.b32.xlu0 %v751, %s756
        %v758 = vpop.permute.xlu0 %757
        %vm759 = vcmp.eq.s32.totalorder %v364, %v677
        %vm760 = vcmp.eq.s32.totalorder %v364, %v681
        %vm761 = vcmp.eq.s32.totalorder %v364, %v688
        %vm762 = vcmp.eq.s32.totalorder %v364, %v692
        %vm763 = vcmp.eq.s32.totalorder %v364, %v699
        %vm764 = vcmp.eq.s32.totalorder %v364, %v703
        %vm765 = vcmp.eq.s32.totalorder %v364, %v710
        %vm766 = vcmp.eq.s32.totalorder %v364, %v714
        %vm767 = vcmp.eq.s32.totalorder %v364, %v721
        %vm768 = vcmp.eq.s32.totalorder %v364, %v725
        %vm769 = vcmp.eq.s32.totalorder %v364, %v732
        %vm770 = vcmp.eq.s32.totalorder %v364, %v736
        %vm771 = vcmp.eq.s32.totalorder %v364, %v743
        %vm772 = vcmp.eq.s32.totalorder %v364, %v747
        %vm773 = vcmp.eq.s32.totalorder %v364, %v754
        %vm774 = vcmp.eq.s32.totalorder %v364, %v758
        %v775 = vsel %vm759, 1, 0
        %v776 = vsel %vm760, 1, 0
        %v777 = vsel %vm761, 1, 0
        %v778 = vsel %vm762, 1, 0
        %v779 = vsel %vm763, 1, 0
        %v780 = vsel %vm764, 1, 0
        %v781 = vsel %vm765, 1, 0
        %v782 = vsel %vm766, 1, 0
        %v783 = vsel %vm767, 1, 0
        %v784 = vsel %vm768, 1, 0
        %v785 = vsel %vm769, 1, 0
        %v786 = vsel %vm770, 1, 0
        %v787 = vsel %vm771, 1, 0
        %v788 = vsel %vm772, 1, 0
        %v789 = vsel %vm773, 1, 0
        %v790 = vsel %vm774, 1, 0
        %v791 = vcvt.s32.f32 %v775
        %v792 = vcvt.s32.f32 %v776
        %v793 = vcvt.s32.f32 %v777
        %v794 = vcvt.s32.f32 %v778
        %v795 = vcvt.s32.f32 %v779
        %v796 = vcvt.s32.f32 %v780
        %v797 = vcvt.s32.f32 %v781
        %v798 = vcvt.s32.f32 %v782
        %v799 = vcvt.s32.f32 %v783
        %v800 = vcvt.s32.f32 %v784
        %v801 = vcvt.s32.f32 %v785
        %v802 = vcvt.s32.f32 %v786
        %v803 = vcvt.s32.f32 %v787
        %v804 = vcvt.s32.f32 %v788
        %v805 = vcvt.s32.f32 %v789
        %v806 = vcvt.s32.f32 %v790
        %v807 = vlaneseq
        %v808 = vshrl.u32 %v807, 7
        %v809 = vsub.s32 1, %v808
        %v810 = vrot.slane %v355, %v809
        %812 = vbcast.lane.b32.xlu0 %v810, 256
        %v813 = vpop.permute.xlu0 %812
        %s815 = sor.u32 256, 8
        %816 = vbcast.lane.b32.xlu0 %v810, %s815
        %v817 = vpop.permute.xlu0 %816
        %v818 = vlaneseq
        %v819 = vshrl.u32 %v818, 7
        %v820 = vsub.s32 1, %v819
        %v821 = vrot.slane %v356, %v820
        %823 = vbcast.lane.b32.xlu0 %v821, 256
        %v824 = vpop.permute.xlu0 %823
        %s826 = sor.u32 256, 8
        %827 = vbcast.lane.b32.xlu0 %v821, %s826
        %v828 = vpop.permute.xlu0 %827
        %v829 = vlaneseq
        %v830 = vshrl.u32 %v829, 7
        %v831 = vsub.s32 1, %v830
        %v832 = vrot.slane %v357, %v831
        %834 = vbcast.lane.b32.xlu0 %v832, 256
        %v835 = vpop.permute.xlu0 %834
        %s837 = sor.u32 256, 8
        %838 = vbcast.lane.b32.xlu0 %v832, %s837
        %v839 = vpop.permute.xlu0 %838
        %v840 = vlaneseq
        %v841 = vshrl.u32 %v840, 7
        %v842 = vsub.s32 1, %v841
        %v843 = vrot.slane %v358, %v842
        %845 = vbcast.lane.b32.xlu0 %v843, 256
        %v846 = vpop.permute.xlu0 %845
        %s848 = sor.u32 256, 8
        %849 = vbcast.lane.b32.xlu0 %v843, %s848
        %v850 = vpop.permute.xlu0 %849
        %v851 = vlaneseq
        %v852 = vshrl.u32 %v851, 7
        %v853 = vsub.s32 1, %v852
        %v854 = vrot.slane %v359, %v853
        %856 = vbcast.lane.b32.xlu0 %v854, 256
        %v857 = vpop.permute.xlu0 %856
        %s859 = sor.u32 256, 8
        %860 = vbcast.lane.b32.xlu0 %v854, %s859
        %v861 = vpop.permute.xlu0 %860
        %v862 = vlaneseq
        %v863 = vshrl.u32 %v862, 7
        %v864 = vsub.s32 1, %v863
        %v865 = vrot.slane %v360, %v864
        %867 = vbcast.lane.b32.xlu0 %v865, 256
        %v868 = vpop.permute.xlu0 %867
        %s870 = sor.u32 256, 8
        %871 = vbcast.lane.b32.xlu0 %v865, %s870
        %v872 = vpop.permute.xlu0 %871
        %v873 = vlaneseq
        %v874 = vshrl.u32 %v873, 7
        %v875 = vsub.s32 1, %v874
        %v876 = vrot.slane %v361, %v875
        %878 = vbcast.lane.b32.xlu0 %v876, 256
        %v879 = vpop.permute.xlu0 %878
        %s881 = sor.u32 256, 8
        %882 = vbcast.lane.b32.xlu0 %v876, %s881
        %v883 = vpop.permute.xlu0 %882
        %v884 = vlaneseq
        %v885 = vshrl.u32 %v884, 7
        %v886 = vsub.s32 1, %v885
        %v887 = vrot.slane %v362, %v886
        %889 = vbcast.lane.b32.xlu0 %v887, 256
        %v890 = vpop.permute.xlu0 %889
        %s892 = sor.u32 256, 8
        %893 = vbcast.lane.b32.xlu0 %v887, %s892
        %v894 = vpop.permute.xlu0 %893
        %vm895 = vcmp.eq.s32.totalorder %v364, %v813
        %vm896 = vcmp.eq.s32.totalorder %v364, %v817
        %vm897 = vcmp.eq.s32.totalorder %v364, %v824
        %vm898 = vcmp.eq.s32.totalorder %v364, %v828
        %vm899 = vcmp.eq.s32.totalorder %v364, %v835
        %vm900 = vcmp.eq.s32.totalorder %v364, %v839
        %vm901 = vcmp.eq.s32.totalorder %v364, %v846
        %vm902 = vcmp.eq.s32.totalorder %v364, %v850
        %vm903 = vcmp.eq.s32.totalorder %v364, %v857
        %vm904 = vcmp.eq.s32.totalorder %v364, %v861
        %vm905 = vcmp.eq.s32.totalorder %v364, %v868
        %vm906 = vcmp.eq.s32.totalorder %v364, %v872
        %vm907 = vcmp.eq.s32.totalorder %v364, %v879
        %vm908 = vcmp.eq.s32.totalorder %v364, %v883
        %vm909 = vcmp.eq.s32.totalorder %v364, %v890
        %vm910 = vcmp.eq.s32.totalorder %v364, %v894
        %v911 = vsel %vm895, 1, 0
        %v912 = vsel %vm896, 1, 0
        %v913 = vsel %vm897, 1, 0
        %v914 = vsel %vm898, 1, 0
        %v915 = vsel %vm899, 1, 0
        %v916 = vsel %vm900, 1, 0
        %v917 = vsel %vm901, 1, 0
        %v918 = vsel %vm902, 1, 0
        %v919 = vsel %vm903, 1, 0
        %v920 = vsel %vm904, 1, 0
        %v921 = vsel %vm905, 1, 0
        %v922 = vsel %vm906, 1, 0
        %v923 = vsel %vm907, 1, 0
        %v924 = vsel %vm908, 1, 0
        %v925 = vsel %vm909, 1, 0
        %v926 = vsel %vm910, 1, 0
        %v927 = vcvt.s32.f32 %v911
        %v928 = vcvt.s32.f32 %v912
        %v929 = vcvt.s32.f32 %v913
        %v930 = vcvt.s32.f32 %v914
        %v931 = vcvt.s32.f32 %v915
        %v932 = vcvt.s32.f32 %v916
        %v933 = vcvt.s32.f32 %v917
        %v934 = vcvt.s32.f32 %v918
        %v935 = vcvt.s32.f32 %v919
        %v936 = vcvt.s32.f32 %v920
        %v937 = vcvt.s32.f32 %v921
        %v938 = vcvt.s32.f32 %v922
        %v939 = vcvt.s32.f32 %v923
        %v940 = vcvt.s32.f32 %v924
        %v941 = vcvt.s32.f32 %v925
        %v942 = vcvt.s32.f32 %v926
        %v943 = vadd.f32 %v791, %v927
        %v944 = vadd.f32 %v792, %v928
        %v945 = vadd.f32 %v793, %v929
        %v946 = vadd.f32 %v794, %v930
        %v947 = vadd.f32 %v795, %v931
        %v948 = vadd.f32 %v796, %v932
        %v949 = vadd.f32 %v797, %v933
        %v950 = vadd.f32 %v798, %v934
        %v951 = vadd.f32 %v799, %v935
        %v952 = vadd.f32 %v800, %v936
        %v953 = vadd.f32 %v801, %v937
        %v954 = vadd.f32 %v802, %v938
        %v955 = vadd.f32 %v803, %v939
        %v956 = vadd.f32 %v804, %v940
        %v957 = vadd.f32 %v805, %v941
        %v958 = vadd.f32 %v806, %v942
        %v959 = vlaneseq
        %v960 = vshrl.u32 %v959, 7
        %v961 = vsub.s32 2, %v960
        %v962 = vrot.slane %v355, %v961
        %964 = vbcast.lane.b32.xlu0 %v962, 256
        %v965 = vpop.permute.xlu0 %964
        %s967 = sor.u32 256, 8
        %968 = vbcast.lane.b32.xlu0 %v962, %s967
        %v969 = vpop.permute.xlu0 %968
        %v970 = vlaneseq
        %v971 = vshrl.u32 %v970, 7
        %v972 = vsub.s32 2, %v971
        %v973 = vrot.slane %v356, %v972
        %975 = vbcast.lane.b32.xlu0 %v973, 256
        %v976 = vpop.permute.xlu0 %975
        %s978 = sor.u32 256, 8
        %979 = vbcast.lane.b32.xlu0 %v973, %s978
        %v980 = vpop.permute.xlu0 %979
        %v981 = vlaneseq
        %v982 = vshrl.u32 %v981, 7
        %v983 = vsub.s32 2, %v982
        %v984 = vrot.slane %v357, %v983
        %986 = vbcast.lane.b32.xlu0 %v984, 256
        %v987 = vpop.permute.xlu0 %986
        %s989 = sor.u32 256, 8
        %990 = vbcast.lane.b32.xlu0 %v984, %s989
        %v991 = vpop.permute.xlu0 %990
        %v992 = vlaneseq
        %v993 = vshrl.u32 %v992, 7
        %v994 = vsub.s32 2, %v993
        %v995 = vrot.slane %v358, %v994
        %997 = vbcast.lane.b32.xlu0 %v995, 256
        %v998 = vpop.permute.xlu0 %997
        %s1000 = sor.u32 256, 8
        %1001 = vbcast.lane.b32.xlu0 %v995, %s1000
        %v1002 = vpop.permute.xlu0 %1001
        %v1003 = vlaneseq
        %v1004 = vshrl.u32 %v1003, 7
        %v1005 = vsub.s32 2, %v1004
        %v1006 = vrot.slane %v359, %v1005
        %1008 = vbcast.lane.b32.xlu0 %v1006, 256
        %v1009 = vpop.permute.xlu0 %1008
        %s1011 = sor.u32 256, 8
        %1012 = vbcast.lane.b32.xlu0 %v1006, %s1011
        %v1013 = vpop.permute.xlu0 %1012
        %v1014 = vlaneseq
        %v1015 = vshrl.u32 %v1014, 7
        %v1016 = vsub.s32 2, %v1015
        %v1017 = vrot.slane %v360, %v1016
        %1019 = vbcast.lane.b32.xlu0 %v1017, 256
        %v1020 = vpop.permute.xlu0 %1019
        %s1022 = sor.u32 256, 8
        %1023 = vbcast.lane.b32.xlu0 %v1017, %s1022
        %v1024 = vpop.permute.xlu0 %1023
        %v1025 = vlaneseq
        %v1026 = vshrl.u32 %v1025, 7
        %v1027 = vsub.s32 2, %v1026
        %v1028 = vrot.slane %v361, %v1027
        %1030 = vbcast.lane.b32.xlu0 %v1028, 256
        %v1031 = vpop.permute.xlu0 %1030
        %s1033 = sor.u32 256, 8
        %1034 = vbcast.lane.b32.xlu0 %v1028, %s1033
        %v1035 = vpop.permute.xlu0 %1034
        %v1036 = vlaneseq
        %v1037 = vshrl.u32 %v1036, 7
        %v1038 = vsub.s32 2, %v1037
        %v1039 = vrot.slane %v362, %v1038
        %1041 = vbcast.lane.b32.xlu0 %v1039, 256
        %v1042 = vpop.permute.xlu0 %1041
        %s1044 = sor.u32 256, 8
        %1045 = vbcast.lane.b32.xlu0 %v1039, %s1044
        %v1046 = vpop.permute.xlu0 %1045
        %vm1047 = vcmp.eq.s32.totalorder %v364, %v965
        %vm1048 = vcmp.eq.s32.totalorder %v364, %v969
        %vm1049 = vcmp.eq.s32.totalorder %v364, %v976
        %vm1050 = vcmp.eq.s32.totalorder %v364, %v980
        %vm1051 = vcmp.eq.s32.totalorder %v364, %v987
        %vm1052 = vcmp.eq.s32.totalorder %v364, %v991
        %vm1053 = vcmp.eq.s32.totalorder %v364, %v998
        %vm1054 = vcmp.eq.s32.totalorder %v364, %v1002
        %vm1055 = vcmp.eq.s32.totalorder %v364, %v1009
        %vm1056 = vcmp.eq.s32.totalorder %v364, %v1013
        %vm1057 = vcmp.eq.s32.totalorder %v364, %v1020
        %vm1058 = vcmp.eq.s32.totalorder %v364, %v1024
        %vm1059 = vcmp.eq.s32.totalorder %v364, %v1031
        %vm1060 = vcmp.eq.s32.totalorder %v364, %v1035
        %vm1061 = vcmp.eq.s32.totalorder %v364, %v1042
        %vm1062 = vcmp.eq.s32.totalorder %v364, %v1046
        %v1063 = vsel %vm1047, 1, 0
        %v1064 = vsel %vm1048, 1, 0
        %v1065 = vsel %vm1049, 1, 0
        %v1066 = vsel %vm1050, 1, 0
        %v1067 = vsel %vm1051, 1, 0
        %v1068 = vsel %vm1052, 1, 0
        %v1069 = vsel %vm1053, 1, 0
        %v1070 = vsel %vm1054, 1, 0
        %v1071 = vsel %vm1055, 1, 0
        %v1072 = vsel %vm1056, 1, 0
        %v1073 = vsel %vm1057, 1, 0
        %v1074 = vsel %vm1058, 1, 0
        %v1075 = vsel %vm1059, 1, 0
        %v1076 = vsel %vm1060, 1, 0
        %v1077 = vsel %vm1061, 1, 0
        %v1078 = vsel %vm1062, 1, 0
        %v1079 = vcvt.s32.f32 %v1063
        %v1080 = vcvt.s32.f32 %v1064
        %v1081 = vcvt.s32.f32 %v1065
        %v1082 = vcvt.s32.f32 %v1066
        %v1083 = vcvt.s32.f32 %v1067
        %v1084 = vcvt.s32.f32 %v1068
        %v1085 = vcvt.s32.f32 %v1069
        %v1086 = vcvt.s32.f32 %v1070
        %v1087 = vcvt.s32.f32 %v1071
        %v1088 = vcvt.s32.f32 %v1072
        %v1089 = vcvt.s32.f32 %v1073
        %v1090 = vcvt.s32.f32 %v1074
        %v1091 = vcvt.s32.f32 %v1075
        %v1092 = vcvt.s32.f32 %v1076
        %v1093 = vcvt.s32.f32 %v1077
        %v1094 = vcvt.s32.f32 %v1078
        %v1095 = vadd.f32 %v943, %v1079
        %v1096 = vadd.f32 %v944, %v1080
        %v1097 = vadd.f32 %v945, %v1081
        %v1098 = vadd.f32 %v946, %v1082
        %v1099 = vadd.f32 %v947, %v1083
        %v1100 = vadd.f32 %v948, %v1084
        %v1101 = vadd.f32 %v949, %v1085
        %v1102 = vadd.f32 %v950, %v1086
        %v1103 = vadd.f32 %v951, %v1087
        %v1104 = vadd.f32 %v952, %v1088
        %v1105 = vadd.f32 %v953, %v1089
        %v1106 = vadd.f32 %v954, %v1090
        %v1107 = vadd.f32 %v955, %v1091
        %v1108 = vadd.f32 %v956, %v1092
        %v1109 = vadd.f32 %v957, %v1093
        %v1110 = vadd.f32 %v958, %v1094
        %v1111 = vpack.c.bf16 %v1096, %v1095
        %v1112 = vpack.c.bf16 %v1098, %v1097
        %v1113 = vpack.c.bf16 %v1100, %v1099
        %v1114 = vpack.c.bf16 %v1102, %v1101
        %v1115 = vpack.c.bf16 %v1104, %v1103
        %v1116 = vpack.c.bf16 %v1106, %v1105
        %v1117 = vpack.c.bf16 %v1108, %v1107
        %v1118 = vpack.c.bf16 %v1110, %v1109
        %v1120 = vsel %vm528, %v1111, 0
        %v1123 = vsel %vm528, %v1112, 0
        %v1126 = vsel %vm528, %v1113, 0
        %v1129 = vsel %vm528, %v1114, 0
        %v1132 = vsel %vm528, %v1115, 0
        %v1135 = vsel %vm528, %v1116, 0
        %v1138 = vsel %vm528, %v1117, 0
        %v1141 = vsel %vm528, %v1118, 0
        %1143 = vmatprep.subr.bf16.mxu0 0
        %1144 = vmatpush1.bf16.msra.mxu0 0
        %1145 = vmatprep.subr.bf16.mxu0 0
        %1146 = vmatpush1.bf16.msra.mxu0 %v534
        %1147 = vmatprep.subr.bf16.mxu0 0
        %1148 = vmatpush1.bf16.msra.mxu0 %v317
        %1149 = vmatprep.subr.bf16.mxu0 0
        %1150 = vmatpush1.bf16.msra.mxu0 %v316
        %1151 = vmatprep.subr.bf16.mxu0 0
        %1152 = vmatpush1.bf16.msra.mxu0 %v315
        %1153 = vmatprep.subr.bf16.mxu0 0
        %1154 = vmatpush1.bf16.msra.mxu0 %v314
        %1155 = vmatprep.subr.bf16.mxu0 0
        %1156 = vmatpush1.bf16.msra.mxu0 %v313
        %1157 = vmatprep.subr.bf16.mxu0 0
        %1158 = vmatpush1.bf16.msra.mxu0 %v312
        %1159 = vmatprep.subr.bf16.mxu0 0
        %1160 = vmatpush2.bf16.msra.mxu0 0
        %1161 = vmatprep.subr.bf16.mxu0 0
        %1162 = vmatpush2.bf16.msra.mxu0 0
        %1163 = vmatprep.subr.bf16.mxu0 0
        %1164 = vmatpush2.bf16.msra.mxu0 0
        %1165 = vmatprep.subr.bf16.mxu0 0
        %1166 = vmatpush2.bf16.msra.mxu0 0
        %1167 = vmatprep.subr.bf16.mxu0 0
        %1168 = vmatpush2.bf16.msra.mxu0 0
        %1169 = vmatprep.subr.bf16.mxu0 0
        %1170 = vmatpush2.bf16.msra.mxu0 0
        %1171 = vmatprep.subr.bf16.mxu0 0
        %1172 = vmatpush2.bf16.msra.mxu0 0
        %1173 = vmatprep.subr.bf16.mxu0 0
        %1174 = vmatpush2.bf16.msra.mxu0 0
        %1175 = vmatprep.mubr.bf16.mxu0 0
        %1176 = vmatmul.mubr.bf16.gmra.mxu0 %v1120
        %v1177 = vpop.f32.mrf.mxu0
        %v1178 = vadd.f32 0.0, %v1177
        %v1179 = vpop.f32.mrf.mxu0
        %v1180 = vpop.f32.mrf.mxu0
        %v1181 = vadd.f32 0.0, %v1180
        %v1182 = vpop.f32.mrf.mxu0
        %1183 = vmatprep.mubr.bf16.mxu0 0
        %1184 = vmatmul.mubr.bf16.gmra.mxu0 %v1123
        %v1185 = vpop.f32.mrf.mxu0
        %v1186 = vadd.f32 0.0, %v1185
        %v1187 = vpop.f32.mrf.mxu0
        %v1188 = vpop.f32.mrf.mxu0
        %v1189 = vadd.f32 0.0, %v1188
        %v1190 = vpop.f32.mrf.mxu0
        %1191 = vmatprep.mubr.bf16.mxu0 0
        %1192 = vmatmul.mubr.bf16.gmra.mxu0 %v1126
        %v1193 = vpop.f32.mrf.mxu0
        %v1194 = vadd.f32 0.0, %v1193
        %v1195 = vpop.f32.mrf.mxu0
        %v1196 = vpop.f32.mrf.mxu0
        %v1197 = vadd.f32 0.0, %v1196
        %v1198 = vpop.f32.mrf.mxu0
        %1199 = vmatprep.mubr.bf16.mxu0 0
        %1200 = vmatmul.mubr.bf16.gmra.mxu0 %v1129
        %v1201 = vpop.f32.mrf.mxu0
        %v1202 = vadd.f32 0.0, %v1201
        %v1203 = vpop.f32.mrf.mxu0
        %v1204 = vpop.f32.mrf.mxu0
        %v1205 = vadd.f32 0.0, %v1204
        %v1206 = vpop.f32.mrf.mxu0
        %1207 = vmatprep.mubr.bf16.mxu0 0
        %1208 = vmatmul.mubr.bf16.gmra.mxu0 %v1132
        %v1209 = vpop.f32.mrf.mxu0
        %v1210 = vadd.f32 0.0, %v1209
        %v1211 = vpop.f32.mrf.mxu0
        %v1212 = vpop.f32.mrf.mxu0
        %v1213 = vadd.f32 0.0, %v1212
        %v1214 = vpop.f32.mrf.mxu0
        %1215 = vmatprep.mubr.bf16.mxu0 0
        %1216 = vmatmul.mubr.bf16.gmra.mxu0 %v1135
        %v1217 = vpop.f32.mrf.mxu0
        %v1218 = vadd.f32 0.0, %v1217
        %v1219 = vpop.f32.mrf.mxu0
        %v1220 = vpop.f32.mrf.mxu0
        %v1221 = vadd.f32 0.0, %v1220
        %v1222 = vpop.f32.mrf.mxu0
        %1223 = vmatprep.mubr.bf16.mxu0 0
        %1224 = vmatmul.mubr.bf16.gmra.mxu0 %v1138
        %v1225 = vpop.f32.mrf.mxu0
        %v1226 = vadd.f32 0.0, %v1225
        %v1227 = vpop.f32.mrf.mxu0
        %v1228 = vpop.f32.mrf.mxu0
        %v1229 = vadd.f32 0.0, %v1228
        %v1230 = vpop.f32.mrf.mxu0
        %1231 = vmatprep.mubr.bf16.mxu0 0
        %1232 = vmatmul.mubr.bf16.gmra.mxu0 %v1141
        %v1233 = vpop.f32.mrf.mxu0
        %v1234 = vadd.f32 0.0, %v1233
        %v1235 = vpop.f32.mrf.mxu0
        %v1236 = vpop.f32.mrf.mxu0
        %v1237 = vadd.f32 0.0, %v1236
        %v1238 = vpop.f32.mrf.mxu0
        %1239 = vdwg.mxu0
        %1240 = vmatprep.subr.bf16.mxu0 0
        %1241 = vmatpush1.bf16.msra.mxu0 0
        %1242 = vmatprep.subr.bf16.mxu0 0
        %1243 = vmatpush1.bf16.msra.mxu0 %v577
        %1244 = vmatprep.subr.bf16.mxu0 0
        %1245 = vmatpush1.bf16.msra.mxu0 %v282
        %1246 = vmatprep.subr.bf16.mxu0 0
        %1247 = vmatpush1.bf16.msra.mxu0 %v281
        %1248 = vmatprep.subr.bf16.mxu0 0
        %1249 = vmatpush1.bf16.msra.mxu0 %v280
        %1250 = vmatprep.subr.bf16.mxu0 0
        %1251 = vmatpush1.bf16.msra.mxu0 %v279
        %1252 = vmatprep.subr.bf16.mxu0 0
        %1253 = vmatpush1.bf16.msra.mxu0 %v278
        %1254 = vmatprep.subr.bf16.mxu0 0
        %1255 = vmatpush1.bf16.msra.mxu0 %v277
        %1256 = vmatprep.subr.bf16.mxu0 0
        %1257 = vmatpush2.bf16.msra.mxu0 0
        %1258 = vmatprep.subr.bf16.mxu0 0
        %1259 = vmatpush2.bf16.msra.mxu0 0
        %1260 = vmatprep.subr.bf16.mxu0 0
        %1261 = vmatpush2.bf16.msra.mxu0 0
        %1262 = vmatprep.subr.bf16.mxu0 0
        %1263 = vmatpush2.bf16.msra.mxu0 0
        %1264 = vmatprep.subr.bf16.mxu0 0
        %1265 = vmatpush2.bf16.msra.mxu0 0
        %1266 = vmatprep.subr.bf16.mxu0 0
        %1267 = vmatpush2.bf16.msra.mxu0 0
        %1268 = vmatprep.subr.bf16.mxu0 0
        %1269 = vmatpush2.bf16.msra.mxu0 0
        %1270 = vmatprep.subr.bf16.mxu0 0
        %1271 = vmatpush2.bf16.msra.mxu0 0
        %1272 = vmatprep.mubr.bf16.mxu0 0
        %1273 = vmatmul.mubr.bf16.gmra.mxu0 %v1120
        %v1274 = vpop.f32.mrf.mxu0
        %v1275 = vadd.f32 %v1178, %v1274
        %v1276 = vpop.f32.mrf.mxu0
        %v1277 = vpop.f32.mrf.mxu0
        %v1278 = vadd.f32 %v1181, %v1277
        %v1279 = vpop.f32.mrf.mxu0
        %1280 = vmatprep.mubr.bf16.mxu0 0
        %1281 = vmatmul.mubr.bf16.gmra.mxu0 %v1123
        %v1282 = vpop.f32.mrf.mxu0
        %v1283 = vadd.f32 %v1186, %v1282
        %v1284 = vpop.f32.mrf.mxu0
        %v1285 = vpop.f32.mrf.mxu0
        %v1286 = vadd.f32 %v1189, %v1285
        %v1287 = vpop.f32.mrf.mxu0
        %1288 = vmatprep.mubr.bf16.mxu0 0
        %1289 = vmatmul.mubr.bf16.gmra.mxu0 %v1126
        %v1290 = vpop.f32.mrf.mxu0
        %v1291 = vadd.f32 %v1194, %v1290
        %v1292 = vpop.f32.mrf.mxu0
        %v1293 = vpop.f32.mrf.mxu0
        %v1294 = vadd.f32 %v1197, %v1293
        %v1295 = vpop.f32.mrf.mxu0
        %1296 = vmatprep.mubr.bf16.mxu0 0
        %1297 = vmatmul.mubr.bf16.gmra.mxu0 %v1129
        %v1298 = vpop.f32.mrf.mxu0
        %v1299 = vadd.f32 %v1202, %v1298
        %v1300 = vpop.f32.mrf.mxu0
        %v1301 = vpop.f32.mrf.mxu0
        %v1302 = vadd.f32 %v1205, %v1301
        %v1303 = vpop.f32.mrf.mxu0
        %1304 = vmatprep.mubr.bf16.mxu0 0
        %1305 = vmatmul.mubr.bf16.gmra.mxu0 %v1132
        %v1306 = vpop.f32.mrf.mxu0
        %v1307 = vadd.f32 %v1210, %v1306
        %v1308 = vpop.f32.mrf.mxu0
        %v1309 = vpop.f32.mrf.mxu0
        %v1310 = vadd.f32 %v1213, %v1309
        %v1311 = vpop.f32.mrf.mxu0
        %1312 = vmatprep.mubr.bf16.mxu0 0
        %1313 = vmatmul.mubr.bf16.gmra.mxu0 %v1135
        %v1314 = vpop.f32.mrf.mxu0
        %v1315 = vadd.f32 %v1218, %v1314
        %v1316 = vpop.f32.mrf.mxu0
        %v1317 = vpop.f32.mrf.mxu0
        %v1318 = vadd.f32 %v1221, %v1317
        %v1319 = vpop.f32.mrf.mxu0
        %1320 = vmatprep.mubr.bf16.mxu0 0
        %1321 = vmatmul.mubr.bf16.gmra.mxu0 %v1138
        %v1322 = vpop.f32.mrf.mxu0
        %v1323 = vadd.f32 %v1226, %v1322
        %v1324 = vpop.f32.mrf.mxu0
        %v1325 = vpop.f32.mrf.mxu0
        %v1326 = vadd.f32 %v1229, %v1325
        %v1327 = vpop.f32.mrf.mxu0
        %1328 = vmatprep.mubr.bf16.mxu0 0
        %1329 = vmatmul.mubr.bf16.gmra.mxu0 %v1141
        %v1330 = vpop.f32.mrf.mxu0
        %v1331 = vadd.f32 %v1234, %v1330
        %v1332 = vpop.f32.mrf.mxu0
        %v1333 = vpop.f32.mrf.mxu0
        %v1334 = vadd.f32 %v1237, %v1333
        %v1335 = vpop.f32.mrf.mxu0
        %1336 = vdwg.mxu0
        %1337 = vmatprep.subr.bf16.mxu0 0
        %1338 = vmatpush1.bf16.msra.mxu0 0
        %1339 = vmatprep.subr.bf16.mxu0 0
        %1340 = vmatpush1.bf16.msra.mxu0 %v620
        %1341 = vmatprep.subr.bf16.mxu0 0
        %1342 = vmatpush1.bf16.msra.mxu0 %v352
        %1343 = vmatprep.subr.bf16.mxu0 0
        %1344 = vmatpush1.bf16.msra.mxu0 %v351
        %1345 = vmatprep.subr.bf16.mxu0 0
        %1346 = vmatpush1.bf16.msra.mxu0 %v350
        %1347 = vmatprep.subr.bf16.mxu0 0
        %1348 = vmatpush1.bf16.msra.mxu0 %v349
        %1349 = vmatprep.subr.bf16.mxu0 0
        %1350 = vmatpush1.bf16.msra.mxu0 %v348
        %1351 = vmatprep.subr.bf16.mxu0 0
        %1352 = vmatpush1.bf16.msra.mxu0 %v347
        %1353 = vmatprep.subr.bf16.mxu0 0
        %1354 = vmatpush2.bf16.msra.mxu0 0
        %1355 = vmatprep.subr.bf16.mxu0 0
        %1356 = vmatpush2.bf16.msra.mxu0 0
        %1357 = vmatprep.subr.bf16.mxu0 0
        %1358 = vmatpush2.bf16.msra.mxu0 0
        %1359 = vmatprep.subr.bf16.mxu0 0
        %1360 = vmatpush2.bf16.msra.mxu0 0
        %1361 = vmatprep.subr.bf16.mxu0 0
        %1362 = vmatpush2.bf16.msra.mxu0 0
        %1363 = vmatprep.subr.bf16.mxu0 0
        %1364 = vmatpush2.bf16.msra.mxu0 0
        %1365 = vmatprep.subr.bf16.mxu0 0
        %1366 = vmatpush2.bf16.msra.mxu0 0
        %1367 = vmatprep.subr.bf16.mxu0 0
        %1368 = vmatpush2.bf16.msra.mxu0 0
        %1369 = vmatprep.mubr.bf16.mxu0 0
        %1370 = vmatmul.mubr.bf16.gmra.mxu0 %v1120
        %v1371 = vpop.f32.mrf.mxu0
        %v1372 = vadd.f32 0.0, %v1371
        %v1373 = vpop.f32.mrf.mxu0
        %v1374 = vpop.f32.mrf.mxu0
        %v1375 = vadd.f32 0.0, %v1374
        %v1376 = vpop.f32.mrf.mxu0
        %1377 = vmatprep.mubr.bf16.mxu0 0
        %1378 = vmatmul.mubr.bf16.gmra.mxu0 %v1123
        %v1379 = vpop.f32.mrf.mxu0
        %v1380 = vadd.f32 0.0, %v1379
        %v1381 = vpop.f32.mrf.mxu0
        %v1382 = vpop.f32.mrf.mxu0
        %v1383 = vadd.f32 0.0, %v1382
        %v1384 = vpop.f32.mrf.mxu0
        %1385 = vmatprep.mubr.bf16.mxu0 0
        %1386 = vmatmul.mubr.bf16.gmra.mxu0 %v1126
        %v1387 = vpop.f32.mrf.mxu0
        %v1388 = vadd.f32 0.0, %v1387
        %v1389 = vpop.f32.mrf.mxu0
        %v1390 = vpop.f32.mrf.mxu0
        %v1391 = vadd.f32 0.0, %v1390
        %v1392 = vpop.f32.mrf.mxu0
        %1393 = vmatprep.mubr.bf16.mxu0 0
        %1394 = vmatmul.mubr.bf16.gmra.mxu0 %v1129
        %v1395 = vpop.f32.mrf.mxu0
        %v1396 = vadd.f32 0.0, %v1395
        %v1397 = vpop.f32.mrf.mxu0
        %v1398 = vpop.f32.mrf.mxu0
        %v1399 = vadd.f32 0.0, %v1398
        %v1400 = vpop.f32.mrf.mxu0
        %1401 = vmatprep.mubr.bf16.mxu0 0
        %1402 = vmatmul.mubr.bf16.gmra.mxu0 %v1132
        %v1403 = vpop.f32.mrf.mxu0
        %v1404 = vadd.f32 0.0, %v1403
        %v1405 = vpop.f32.mrf.mxu0
        %v1406 = vpop.f32.mrf.mxu0
        %v1407 = vadd.f32 0.0, %v1406
        %v1408 = vpop.f32.mrf.mxu0
        %1409 = vmatprep.mubr.bf16.mxu0 0
        %1410 = vmatmul.mubr.bf16.gmra.mxu0 %v1135
        %v1411 = vpop.f32.mrf.mxu0
        %v1412 = vadd.f32 0.0, %v1411
        %v1413 = vpop.f32.mrf.mxu0
        %v1414 = vpop.f32.mrf.mxu0
        %v1415 = vadd.f32 0.0, %v1414
        %v1416 = vpop.f32.mrf.mxu0
        %1417 = vmatprep.mubr.bf16.mxu0 0
        %1418 = vmatmul.mubr.bf16.gmra.mxu0 %v1138
        %v1419 = vpop.f32.mrf.mxu0
        %v1420 = vadd.f32 0.0, %v1419
        %v1421 = vpop.f32.mrf.mxu0
        %v1422 = vpop.f32.mrf.mxu0
        %v1423 = vadd.f32 0.0, %v1422
        %v1424 = vpop.f32.mrf.mxu0
        %1425 = vmatprep.mubr.bf16.mxu0 0
        %1426 = vmatmul.mubr.bf16.gmra.mxu0 %v1141
        %v1427 = vpop.f32.mrf.mxu0
        %v1428 = vadd.f32 0.0, %v1427
        %v1429 = vpop.f32.mrf.mxu0
        %v1430 = vpop.f32.mrf.mxu0
        %v1431 = vadd.f32 0.0, %v1430
        %v1432 = vpop.f32.mrf.mxu0
        %1433 = vdwg.mxu0
        %v1434 = vadd.f32 %v1275, %v1372
        %v1435 = vadd.f32 %v1278, %v1375
        %v1436 = vadd.f32 %v1283, %v1380
        %v1437 = vadd.f32 %v1286, %v1383
        %v1438 = vadd.f32 %v1291, %v1388
        %v1439 = vadd.f32 %v1294, %v1391
        %v1440 = vadd.f32 %v1299, %v1396
        %v1441 = vadd.f32 %v1302, %v1399
        %v1442 = vadd.f32 %v1307, %v1404
        %v1443 = vadd.f32 %v1310, %v1407
        %v1444 = vadd.f32 %v1315, %v1412
        %v1445 = vadd.f32 %v1318, %v1415
        %v1446 = vadd.f32 %v1323, %v1420
        %v1447 = vadd.f32 %v1326, %v1423
        %v1448 = vadd.f32 %v1331, %v1428
        %v1449 = vadd.f32 %v1334, %v1431
        %v1450 = vmul.f32 %v1434, %v663
        %v1451 = vmul.f32 %v1435, %v663
        %v1452 = vmul.f32 %v1436, %v663
        %v1453 = vmul.f32 %v1437, %v663
        %v1454 = vmul.f32 %v1438, %v663
        %v1455 = vmul.f32 %v1439, %v663
        %v1456 = vmul.f32 %v1440, %v663
        %v1457 = vmul.f32 %v1441, %v663
        %v1458 = vmul.f32 %v1442, %v663
        %v1459 = vmul.f32 %v1443, %v663
        %v1460 = vmul.f32 %v1444, %v663
        %v1461 = vmul.f32 %v1445, %v663
        %v1462 = vmul.f32 %v1446, %v663
        %v1463 = vmul.f32 %v1447, %v663
        %v1464 = vmul.f32 %v1448, %v663
        %v1465 = vmul.f32 %v1449, %v663
        %v1467 = vcombine.high %v506, %v506
        %v1469 = vunpack.c.l.s4 1966171168
        %v1470 = vunpack.c.0.s8 %v1469
        %v1471 = vlaneseq
        %v1472 = vshrl.u32 %v1471, 7
        %v1473 = vsub.s32 %v1470, %v1472
        %v1474 = vrot.slane %v506, %v1473
        %v1476 = vunpack.c.l.s4 1966171168
        %v1477 = vunpack.c.0.s8 %v1476
        %v1478 = vlaneseq
        %v1479 = vshrl.u32 %v1478, 7
        %v1480 = vsub.s32 %v1477, %v1479
        %v1481 = vrot.slane %v1467, %v1480
        %v1482 = vcombine.high %v1474, %v1474
        %v1483 = vcombine.high %v1481, %v1481
        %v1485 = vunpack.c.l.s4 1966171168
        %v1486 = vunpack.c.0.s8 %v1485
        %v1487 = vlaneseq
        %v1488 = vshrl.u32 %v1487, 7
        %v1489 = vsub.s32 %v1486, %v1488
        %v1490 = vrot.slane %v1474, %v1489
        %v1492 = vunpack.c.l.s4 1966171168
        %v1493 = vunpack.c.0.s8 %v1492
        %v1494 = vlaneseq
        %v1495 = vshrl.u32 %v1494, 7
        %v1496 = vsub.s32 %v1493, %v1495
        %v1497 = vrot.slane %v1481, %v1496
        %v1499 = vunpack.c.l.s4 1966171168
        %v1500 = vunpack.c.0.s8 %v1499
        %v1501 = vlaneseq
        %v1502 = vshrl.u32 %v1501, 7
        %v1503 = vsub.s32 %v1500, %v1502
        %v1504 = vrot.slane %v1482, %v1503
        %v1506 = vunpack.c.l.s4 1966171168
        %v1507 = vunpack.c.0.s8 %v1506
        %v1508 = vlaneseq
        %v1509 = vshrl.u32 %v1508, 7
        %v1510 = vsub.s32 %v1507, %v1509
        %v1511 = vrot.slane %v1483, %v1510
        %v1512 = vcombine.high %v1490, %v1490
        %v1513 = vcombine.high %v1497, %v1497
        %v1514 = vcombine.high %v1504, %v1504
        %v1515 = vcombine.high %v1511, %v1511
        %v1516 = vlaneseq
        %v1517 = vshrl.u32 %v1516, 7
        %v1518 = vsub.s32 0, %v1517
        %v1519 = vrot.slane %v1490, %v1518
        %v1520 = vlaneseq
        %v1521 = vshrl.u32 %v1520, 7
        %v1522 = vsub.s32 0, %v1521
        %v1523 = vrot.slane %v1504, %v1522
        %v1524 = vlaneseq
        %v1525 = vshrl.u32 %v1524, 7
        %v1526 = vsub.s32 0, %v1525
        %v1527 = vrot.slane %v1512, %v1526
        %v1528 = vlaneseq
        %v1529 = vshrl.u32 %v1528, 7
        %v1530 = vsub.s32 0, %v1529
        %v1531 = vrot.slane %v1514, %v1530
        %v1532 = vlaneseq
        %v1533 = vshrl.u32 %v1532, 7
        %v1534 = vsub.s32 0, %v1533
        %v1535 = vrot.slane %v1497, %v1534
        %v1536 = vlaneseq
        %v1537 = vshrl.u32 %v1536, 7
        %v1538 = vsub.s32 0, %v1537
        %v1539 = vrot.slane %v1511, %v1538
        %v1540 = vlaneseq
        %v1541 = vshrl.u32 %v1540, 7
        %v1542 = vsub.s32 0, %v1541
        %v1543 = vrot.slane %v1513, %v1542
        %v1544 = vlaneseq
        %v1545 = vshrl.u32 %v1544, 7
        %v1546 = vsub.s32 0, %v1545
        %v1547 = vrot.slane %v1515, %v1546
        %v1556 = vsub.f32 %v1519, %v1450
        %v1557 = vsub.f32 %v1519, %v1451
        %v1558 = vsub.f32 %v1523, %v1452
        %v1559 = vsub.f32 %v1523, %v1453
        %v1560 = vsub.f32 %v1527, %v1454
        %v1561 = vsub.f32 %v1527, %v1455
        %v1562 = vsub.f32 %v1531, %v1456
        %v1563 = vsub.f32 %v1531, %v1457
        %v1564 = vsub.f32 %v1535, %v1458
        %v1565 = vsub.f32 %v1535, %v1459
        %v1566 = vsub.f32 %v1539, %v1460
        %v1567 = vsub.f32 %v1539, %v1461
        %v1568 = vsub.f32 %v1543, %v1462
        %v1569 = vsub.f32 %v1543, %v1463
        %v1570 = vsub.f32 %v1547, %v1464
        %v1571 = vsub.f32 %v1547, %v1465
        %v1572 = vmul.f32 %v1556, %v1556
        %v1573 = vmul.f32 %v1557, %v1557
        %v1574 = vmul.f32 %v1558, %v1558
        %v1575 = vmul.f32 %v1559, %v1559
        %v1576 = vmul.f32 %v1560, %v1560
        %v1577 = vmul.f32 %v1561, %v1561
        %v1578 = vmul.f32 %v1562, %v1562
        %v1579 = vmul.f32 %v1563, %v1563
        %v1580 = vmul.f32 %v1564, %v1564
        %v1581 = vmul.f32 %v1565, %v1565
        %v1582 = vmul.f32 %v1566, %v1566
        %v1583 = vmul.f32 %v1567, %v1567
        %v1584 = vmul.f32 %v1568, %v1568
        %v1585 = vmul.f32 %v1569, %v1569
        %v1586 = vmul.f32 %v1570, %v1570
        %v1587 = vmul.f32 %v1571, %v1571
        %v1588 = vsel %vm667, %v1572, 0.0
        %1589 = vadd.xlane.f32.xlu0 %v1588
        %v1590 = vpop.xlane.xlu0 %1589
        %v1591 = vsel %vm667, %v1573, 0.0
        %1592 = vadd.xlane.f32.xlu0 %v1591
        %v1593 = vpop.xlane.xlu0 %1592
        %v1594 = vsel %vm667, %v1574, 0.0
        %1595 = vadd.xlane.f32.xlu0 %v1594
        %v1596 = vpop.xlane.xlu0 %1595
        %v1597 = vsel %vm667, %v1575, 0.0
        %1598 = vadd.xlane.f32.xlu0 %v1597
        %v1599 = vpop.xlane.xlu0 %1598
        %v1600 = vsel %vm667, %v1576, 0.0
        %1601 = vadd.xlane.f32.xlu0 %v1600
        %v1602 = vpop.xlane.xlu0 %1601
        %v1603 = vsel %vm667, %v1577, 0.0
        %1604 = vadd.xlane.f32.xlu0 %v1603
        %v1605 = vpop.xlane.xlu0 %1604
        %v1606 = vsel %vm667, %v1578, 0.0
        %1607 = vadd.xlane.f32.xlu0 %v1606
        %v1608 = vpop.xlane.xlu0 %1607
        %v1609 = vsel %vm667, %v1579, 0.0
        %1610 = vadd.xlane.f32.xlu0 %v1609
        %v1611 = vpop.xlane.xlu0 %1610
        %v1612 = vsel %vm667, %v1580, 0.0
        %1613 = vadd.xlane.f32.xlu0 %v1612
        %v1614 = vpop.xlane.xlu0 %1613
        %v1615 = vsel %vm667, %v1581, 0.0
        %1616 = vadd.xlane.f32.xlu0 %v1615
        %v1617 = vpop.xlane.xlu0 %1616
        %v1618 = vsel %vm667, %v1582, 0.0
        %1619 = vadd.xlane.f32.xlu0 %v1618
        %v1620 = vpop.xlane.xlu0 %1619
        %v1621 = vsel %vm667, %v1583, 0.0
        %1622 = vadd.xlane.f32.xlu0 %v1621
        %v1623 = vpop.xlane.xlu0 %1622
        %v1624 = vsel %vm667, %v1584, 0.0
        %1625 = vadd.xlane.f32.xlu0 %v1624
        %v1626 = vpop.xlane.xlu0 %1625
        %v1627 = vsel %vm667, %v1585, 0.0
        %1628 = vadd.xlane.f32.xlu0 %v1627
        %v1629 = vpop.xlane.xlu0 %1628
        %v1630 = vsel %vm667, %v1586, 0.0
        %1631 = vadd.xlane.f32.xlu0 %v1630
        %v1632 = vpop.xlane.xlu0 %1631
        %v1633 = vsel %vm667, %v1587, 0.0
        %1634 = vadd.xlane.f32.xlu0 %v1633
        %v1635 = vpop.xlane.xlu0 %1634
        %v1652 = vlaneseq
        %v1653 = vshrl.u32 %v1652, 7
        %v1654 = vsub.s32 %v364, %v1653
        %v1655 = vrot.slane %v1590, %v1654
        %v1656 = vadd.s32 %v364, 4294967288
        %v1657 = vlaneseq
        %v1658 = vshrl.u32 %v1657, 7
        %v1659 = vsub.s32 %v1656, %v1658
        %v1660 = vrot.slane %v1593, %v1659
        %vm1661 = vcmask 130112
        %v1662 = vsel %vm1661, %v1660, %v1655
        %v1663 = vlaneseq
        %v1664 = vshrl.u32 %v1663, 7
        %v1665 = vsub.s32 %v364, %v1664
        %v1666 = vrot.slane %v1596, %v1665
        %v1667 = vlaneseq
        %v1668 = vshrl.u32 %v1667, 7
        %v1669 = vsub.s32 %v1656, %v1668
        %v1670 = vrot.slane %v1599, %v1669
        %v1671 = vsel %vm1661, %v1670, %v1666
        %v1672 = vlaneseq
        %v1673 = vshrl.u32 %v1672, 7
        %v1674 = vsub.s32 %v364, %v1673
        %v1675 = vrot.slane %v1602, %v1674
        %v1676 = vlaneseq
        %v1677 = vshrl.u32 %v1676, 7
        %v1678 = vsub.s32 %v1656, %v1677
        %v1679 = vrot.slane %v1605, %v1678
        %v1680 = vsel %vm1661, %v1679, %v1675
        %v1681 = vlaneseq
        %v1682 = vshrl.u32 %v1681, 7
        %v1683 = vsub.s32 %v364, %v1682
        %v1684 = vrot.slane %v1608, %v1683
        %v1685 = vlaneseq
        %v1686 = vshrl.u32 %v1685, 7
        %v1687 = vsub.s32 %v1656, %v1686
        %v1688 = vrot.slane %v1611, %v1687
        %v1689 = vsel %vm1661, %v1688, %v1684
        %v1690 = vlaneseq
        %v1691 = vshrl.u32 %v1690, 7
        %v1692 = vsub.s32 %v364, %v1691
        %v1693 = vrot.slane %v1614, %v1692
        %v1694 = vlaneseq
        %v1695 = vshrl.u32 %v1694, 7
        %v1696 = vsub.s32 %v1656, %v1695
        %v1697 = vrot.slane %v1617, %v1696
        %v1698 = vsel %vm1661, %v1697, %v1693
        %v1699 = vlaneseq
        %v1700 = vshrl.u32 %v1699, 7
        %v1701 = vsub.s32 %v364, %v1700
        %v1702 = vrot.slane %v1620, %v1701
        %v1703 = vlaneseq
        %v1704 = vshrl.u32 %v1703, 7
        %v1705 = vsub.s32 %v1656, %v1704
        %v1706 = vrot.slane %v1623, %v1705
        %v1707 = vsel %vm1661, %v1706, %v1702
        %v1708 = vlaneseq
        %v1709 = vshrl.u32 %v1708, 7
        %v1710 = vsub.s32 %v364, %v1709
        %v1711 = vrot.slane %v1626, %v1710
        %v1712 = vlaneseq
        %v1713 = vshrl.u32 %v1712, 7
        %v1714 = vsub.s32 %v1656, %v1713
        %v1715 = vrot.slane %v1629, %v1714
        %v1716 = vsel %vm1661, %v1715, %v1711
        %v1717 = vlaneseq
        %v1718 = vshrl.u32 %v1717, 7
        %v1719 = vsub.s32 %v364, %v1718
        %v1720 = vrot.slane %v1632, %v1719
        %v1721 = vlaneseq
        %v1722 = vshrl.u32 %v1721, 7
        %v1723 = vsub.s32 %v1656, %v1722
        %v1724 = vrot.slane %v1635, %v1723
        %v1725 = vsel %vm1661, %v1724, %v1720
        %vm1726 = vcmask 1041409
        %v1727 = vsel %vm1726, %v1671, %v1662
        %vm1728 = vcmask 1042434
        %v1729 = vsel %vm1728, %v1680, %v1727
        %vm1730 = vcmask 1043459
        %v1731 = vsel %vm1730, %v1689, %v1729
        %vm1732 = vcmask 1044484
        %v1733 = vsel %vm1732, %v1698, %v1731
        %vm1734 = vcmask 1045509
        %v1735 = vsel %vm1734, %v1707, %v1733
        %vm1736 = vcmask 1046534
        %v1737 = vsel %vm1736, %v1716, %v1735
        %vm1738 = vcmask 1047559
        %v1739 = vsel %vm1738, %v1725, %v1737
        %vm1741 = vcmask 130048
        %v1742 = vsel %vm1741, %v1739, inf
        %1743 = vmin.xlane.f32.xlu0 %v1742
        %v1744 = vpop.xlane.xlu0 %1743
        %vm1745 = vcmp.eq.s32.totalorder %v364, 17
        %v1746 = vsel %vm1745, %v1744, %v670
        %1747 = vst [vmem:[%s204] sm:$0xff] %v1746
        %1748 = vst.msk [vmem:[%s204] sm:$0xff] %vm1741, %v1739
        %s1749 = sand.u32 %s120, 1
        %s1750 = scalar_lea.sflag [#allocation3], %s1749
        %s1751 = sand.u32 %s120, 1
        %s1752 = smul.addr %s1751, 8
        %s1753 = scalar_lea.vmem [#allocation2], %s1752
        // Predicated region
        $region37: #{tpu_custom_call.1} parent=35 // pred_check
          %p1754 = pneg %p130
        $region38: #{tpu_custom_call.1} parent=35 // pred_check_branch
          %1756 = sbr.rel (%p1754) target = $region40
        $region39: #{tpu_custom_call.1} parent=35 // pred_region
          %s1758 = ssub.s32 128, 128
          %1759 = vsyncadd %s1750, %s1758
          %s1760 = smul.addr %s18, 128
          %s1761 = scalar_lea.hbm %s4, %s1760
          %s1763 = sshll.u32 %s1753, 4
          %s1764 = int_to_ptr.vmem [resolvable:$true] %s1763
          %1766 = dma.vmem_to_hbm [thread:$0]  %s1764, 128, %s1761, %s1750
        $region40: #{tpu_custom_call.1} parent=35 // pred_fallthru
          _
      $region36: #{tpu_custom_call.1} parent=5 // pred_fallthru
        _
      %p1767 = scmp.le.s32.totalorder 2, %s13
      // Predicated region
      $region41: #{tpu_custom_call.1} parent=5 // pred_check
        %p1768 = pneg %p1767
      $region42: #{tpu_custom_call.1} parent=5 // pred_check_branch
        %1770 = sbr.rel (%p1768) target = $region44
      $region43: #{tpu_custom_call.1} parent=5 // pred_region
        %s1771 = ssub.s32 %s13, 2
        // Predicated region
        $region45: #{tpu_custom_call.1} parent=43 // pred_check
          %p1772 = pneg %p136
        $region46: #{tpu_custom_call.1} parent=43 // pred_check_branch
          %1774 = sbr.rel (%p1772) target = $region48
        $region47: #{tpu_custom_call.1} parent=43 // pred_region
          %s1775 = sand.u32 %s121, 1
          %s1776 = scalar_lea.sflag [#allocation3], %s1775
          %s1777 = sand.u32 %s121, 1
          %s1778 = smul.addr %s1777, 8
          %s1779 = scalar_lea.vmem [#allocation2], %s1778
          %1780 = dma.done %s1776, 128
        $region48: #{tpu_custom_call.1} parent=43 // pred_fallthru
          _
      $region44: #{tpu_custom_call.1} parent=5 // pred_fallthru
        _
    $region6: #{tpu_custom_call.1} parent=1 // loop_footer
      %s17 = sadd.s32 1, %s13
    $region7: #{tpu_custom_call.1} parent=1 // loop_footer_branch
      %12 = sbr.rel target = $region3
    $region8: #{tpu_custom_call.1} parent=1 // loop_exit
      _
    %1781 = vsyncpa [#allocation3], 1
    %s1782 = scalar_lea.sflag [#allocation3], 1
    %1783 = vsyncpa %s1782, 1

</llo_original>
